<compile_context>
chip_gen: v7x
topology: tpu7x:2x2x1
jax: 0.10.0
libtpu: 0.0.40
codegen_flags: <defaults>
</compile_context>

<pallas_src>
import jax
import jax.numpy as jnp
from jax.experimental import pallas as pl
from jax.experimental.pallas import tpu as pltpu


def _round_up(x, m):
    return ((x + m - 1) // m) * m


def _make_conv_relu_kernel(k, wp, lout):
    """Build the kernel for a k x k conv with padded width wp and output lane length lout."""
    kk = k * k

    def kernel(x_ref, w_ref, o_ref):
        # x_ref: (Cin, LxP)      zero-padded image, lane axis = flattened (row, col) over Wp
        # w_ref: (k*k, Cout, Cin) per-tap weight matrices
        # o_ref: (Cout, Lout)     lane-dense output slab (stride-1 conv over flattened spatial)
        acc = None
        for t in range(kk):                       # statically unrolled: k*k small MXU matmuls
            ki, kj = divmod(t, k)
            d = ki * wp + kj                      # static lane shift for this tap
            xv = x_ref[:, d:d + lout]             # (Cin, Lout) shifted VMEM view
            wt = w_ref[t]                         # (Cout, Cin)
            p = jnp.dot(wt, xv, preferred_element_type=jnp.float32)
            acc = p if acc is None else acc + p
        o_ref[...] = jnp.maximum(acc, 0.0).astype(o_ref.dtype)   # ReLU, applied once

    return kernel


def conv_relu_pallas(x_nchw, w_oihw, *, stride=1, use_bf16=False):
    """relu(conv2d(x)) with symmetric padding pad=(k-1)//2, no bias.

    x_nchw : (N, Cin, H, W)    float32
    w_oihw : (Cout, Cin, k, k) float32   (PyTorch nn.Conv2d weight layout)
    returns: (N, Cout, Ho, Wo) float32   (NCHW, matching PyTorch)
    """
    N, Cin, H, W = x_nchw.shape
    Cout, Cin_w, k, k2 = w_oihw.shape
    assert Cin == Cin_w and k == k2
    pad = (k - 1) // 2
    Hp, Wp = H + 2 * pad, W + 2 * pad
    Ho1, Wo1 = Hp - k + 1, Wp - k + 1                 # stride-1 output size
    Ho = (H + 2 * pad - k) // stride + 1              # PyTorch output-size formula
    Wo = (W + 2 * pad - k) // stride + 1

    # Lane-dense output length for the stride-1 conv over the flattened padded spatial
    # axis.  "Wrap" columns (window crossing a row boundary) are computed then discarded.
    Lout = _round_up(Ho1 * Wp, 128)
    d_max = (k - 1) * Wp + (k - 1)
    lx_needed = Lout + d_max                          # max in-kernel read extent
    diff = lx_needed - Hp * Wp
    extra_rows = max(0, (diff + Wp - 1) // Wp)        # extra zero rows so shifts stay in-bounds
    LxP = (Hp + extra_rows) * Wp

    # ---- layout plumbing (read/written once; no k^2 expansion) ----
    x_flat = jnp.pad(
        x_nchw, ((0, 0), (0, 0), (pad, pad + extra_rows), (pad, pad))
    ).reshape(N, Cin, LxP)                            # contiguous reshape: free
    w_taps = jnp.transpose(w_oihw, (2, 3, 0, 1)).reshape(k * k, Cout, Cin)

    if use_bf16:
        # Halves the streamed HBM bytes; changes numerics vs. the f32 PyTorch module.
        x_flat = x_flat.astype(jnp.bfloat16)
        w_taps = w_taps.astype(jnp.bfloat16)

    kernel = _make_conv_relu_kernel(k, Wp, Lout)

    itemsize = x_flat.dtype.itemsize
    cost = pl.CostEstimate(
        flops=2 * Cout * Cin * k * k * N * Ho1 * Wp,
        transcendentals=0,
        bytes_accessed=(x_flat.size + w_taps.size) * itemsize + N * Cout * Lout * 4,
    )

    out_flat = pl.pallas_call(
        kernel,
        out_shape=jax.ShapeDtypeStruct((N, Cout, Lout), jnp.float32),
        grid_spec=pltpu.PrefetchScalarGridSpec(
            num_scalar_prefetch=0,
            grid=(N,),                                            # one image per step
            in_specs=[
                pl.BlockSpec((None, Cin, LxP), lambda n: (n, 0, 0)),   # padded image (read once)
                pl.BlockSpec((k * k, Cout, Cin), lambda n: (0, 0, 0)),  # resident tap weights
            ],
            out_specs=pl.BlockSpec((None, Cout, Lout), lambda n: (n, 0, 0)),
        ),
        compiler_params=pltpu.CompilerParams(
            dimension_semantics=("parallel",),
            vmem_limit_bytes=32 * 1024 * 1024,
        ),
        cost_estimate=cost,
    )(x_flat, w_taps)

    # (N, Cout, Lout) -> (N, Cout, Ho1, Wp) -> drop wrap columns -> stride subsample.
    out = out_flat[:, :, : Ho1 * Wp].reshape(N, Cout, Ho1, Wp)[:, :, :, :Wo1]
    if stride > 1:
        out = out[:, :, ::stride, ::stride]
    assert out.shape == (N, Cout, Ho, Wo)
    return out


if __name__ == "__main__":
    # Small shapes consistent with the module: convolution(k=3, inp_dim=4, out_dim=8)
    N, Cin, H, W = 2, 4, 16, 16
    Cout, k, stride = 8, 3, 1

    key = jax.random.PRNGKey(0)
    kx, kw = jax.random.split(key)
    x = jax.random.normal(kx, (N, Cin, H, W), dtype=jnp.float32)
    # bias=False because with_bn=True in the module default (bn itself unused in forward).
    w = 0.1 * jax.random.normal(kw, (Cout, Cin, k, k), dtype=jnp.float32)

    out = conv_relu_pallas(x, w, stride=stride)
    out = jax.block_until_ready(out)

    # Reference check against XLA conv + relu (same symmetric padding as PyTorch).
    pad = (k - 1) // 2
    ref = jax.lax.conv_general_dilated(
        x, w, window_strides=(stride, stride),
        padding=((pad, pad), (pad, pad)),
        dimension_numbers=("NCHW", "OIHW", "NCHW"),
    )
    ref = jnp.maximum(ref, 0.0)
    assert out.shape == ref.shape
    assert jnp.allclose(out, ref, atol=1e-4, rtol=1e-4)

    print("KERNEL_OK")
</pallas_src>

<mosaic_0001>
module attributes {stable_mosaic.version = 11 : i64} {
  func.func @kernel(%arg0: i32, %arg1: memref<1x4x432xf32, #tpu.memory_space<vmem>>, %arg2: memref<9x8x4xf32, #tpu.memory_space<vmem>>, %arg3: memref<1x8x384xf32, #tpu.memory_space<vmem>>) attributes {dimension_semantics = [#tpu.dimension_semantics<parallel>], iteration_bounds = array<i64: 2>, scalar_prefetch = 0 : i64, scratch_operands = 0 : i64, tpu.core_type = #tpu.core_type<tc>, window_params = [{transform_indices = @transform_0, window_bounds = array<i64: 1, 4, 432>}, {pipeline_mode = #tpu.pipeline_mode<synchronous>, transform_indices = @transform_1, window_bounds = array<i64: 9, 8, 4>}, {transform_indices = @transform_2, window_bounds = array<i64: 1, 8, 384>}]} {
    %c0 = arith.constant 0 : index
    %c0_0 = arith.constant 0 : index
    %c0_1 = arith.constant 0 : index
    %0 = vector.load %arg1[%c0, %c0_0, %c0_1] : memref<1x4x432xf32, #tpu.memory_space<vmem>>, vector<1x4x384xf32>
    %1 = vector.shape_cast %0 : vector<1x4x384xf32> to vector<4x384xf32>
    %c0_2 = arith.constant 0 : index
    %c0_3 = arith.constant 0 : index
    %c0_4 = arith.constant 0 : index
    %2 = vector.load %arg2[%c0_2, %c0_3, %c0_4] : memref<9x8x4xf32, #tpu.memory_space<vmem>>, vector<1x8x4xf32>
    %3 = vector.shape_cast %2 : vector<1x8x4xf32> to vector<8x4xf32>
    %cst = arith.constant dense<0.000000e+00> : vector<8x384xf32>
    %4 = tpu.matmul %3, %1, %cst {dimension_numbers = #tpu.dot_dimension_numbers<[1], [0], [0], [1], [0, 0, 1, 1], [], []>} : vector<8x4xf32>, vector<4x384xf32>, vector<8x384xf32> -> vector<8x384xf32>
    %c0_5 = arith.constant 0 : index
    %c0_6 = arith.constant 0 : index
    %c1 = arith.constant 1 : index
    %5 = vector.load %arg1[%c0_5, %c0_6, %c1] : memref<1x4x432xf32, #tpu.memory_space<vmem>>, vector<1x4x384xf32>
    %6 = vector.shape_cast %5 : vector<1x4x384xf32> to vector<4x384xf32>
    %c1_7 = arith.constant 1 : index
    %c0_8 = arith.constant 0 : index
    %c0_9 = arith.constant 0 : index
    %7 = vector.load %arg2[%c1_7, %c0_8, %c0_9] : memref<9x8x4xf32, #tpu.memory_space<vmem>>, vector<1x8x4xf32>
    %8 = vector.shape_cast %7 : vector<1x8x4xf32> to vector<8x4xf32>
    %cst_10 = arith.constant dense<0.000000e+00> : vector<8x384xf32>
    %9 = tpu.matmul %8, %6, %cst_10 {dimension_numbers = #tpu.dot_dimension_numbers<[1], [0], [0], [1], [0, 0, 1, 1], [], []>} : vector<8x4xf32>, vector<4x384xf32>, vector<8x384xf32> -> vector<8x384xf32>
    %10 = arith.addf %4, %9 : vector<8x384xf32>
    %c0_11 = arith.constant 0 : index
    %c0_12 = arith.constant 0 : index
    %c2 = arith.constant 2 : index
    %11 = vector.load %arg1[%c0_11, %c0_12, %c2] : memref<1x4x432xf32, #tpu.memory_space<vmem>>, vector<1x4x384xf32>
    %12 = vector.shape_cast %11 : vector<1x4x384xf32> to vector<4x384xf32>
    %c2_13 = arith.constant 2 : index
    %c0_14 = arith.constant 0 : index
    %c0_15 = arith.constant 0 : index
    %13 = vector.load %arg2[%c2_13, %c0_14, %c0_15] : memref<9x8x4xf32, #tpu.memory_space<vmem>>, vector<1x8x4xf32>
    %14 = vector.shape_cast %13 : vector<1x8x4xf32> to vector<8x4xf32>
    %cst_16 = arith.constant dense<0.000000e+00> : vector<8x384xf32>
    %15 = tpu.matmul %14, %12, %cst_16 {dimension_numbers = #tpu.dot_dimension_numbers<[1], [0], [0], [1], [0, 0, 1, 1], [], []>} : vector<8x4xf32>, vector<4x384xf32>, vector<8x384xf32> -> vector<8x384xf32>
    %16 = arith.addf %10, %15 : vector<8x384xf32>
    %c0_17 = arith.constant 0 : index
    %c0_18 = arith.constant 0 : index
    %c18 = arith.constant 18 : index
    %17 = vector.load %arg1[%c0_17, %c0_18, %c18] : memref<1x4x432xf32, #tpu.memory_space<vmem>>, vector<1x4x384xf32>
    %18 = vector.shape_cast %17 : vector<1x4x384xf32> to vector<4x384xf32>
    %c3 = arith.constant 3 : index
    %c0_19 = arith.constant 0 : index
    %c0_20 = arith.constant 0 : index
    %19 = vector.load %arg2[%c3, %c0_19, %c0_20] : memref<9x8x4xf32, #tpu.memory_space<vmem>>, vector<1x8x4xf32>
    %20 = vector.shape_cast %19 : vector<1x8x4xf32> to vector<8x4xf32>
    %cst_21 = arith.constant dense<0.000000e+00> : vector<8x384xf32>
    %21 = tpu.matmul %20, %18, %cst_21 {dimension_numbers = #tpu.dot_dimension_numbers<[1], [0], [0], [1], [0, 0, 1, 1], [], []>} : vector<8x4xf32>, vector<4x384xf32>, vector<8x384xf32> -> vector<8x384xf32>
    %22 = arith.addf %16, %21 : vector<8x384xf32>
    %c0_22 = arith.constant 0 : index
    %c0_23 = arith.constant 0 : index
    %c19 = arith.constant 19 : index
    %23 = vector.load %arg1[%c0_22, %c0_23, %c19] : memref<1x4x432xf32, #tpu.memory_space<vmem>>, vector<1x4x384xf32>
    %24 = vector.shape_cast %23 : vector<1x4x384xf32> to vector<4x384xf32>
    %c4 = arith.constant 4 : index
    %c0_24 = arith.constant 0 : index
    %c0_25 = arith.constant 0 : index
    %25 = vector.load %arg2[%c4, %c0_24, %c0_25] : memref<9x8x4xf32, #tpu.memory_space<vmem>>, vector<1x8x4xf32>
    %26 = vector.shape_cast %25 : vector<1x8x4xf32> to vector<8x4xf32>
    %cst_26 = arith.constant dense<0.000000e+00> : vector<8x384xf32>
    %27 = tpu.matmul %26, %24, %cst_26 {dimension_numbers = #tpu.dot_dimension_numbers<[1], [0], [0], [1], [0, 0, 1, 1], [], []>} : vector<8x4xf32>, vector<4x384xf32>, vector<8x384xf32> -> vector<8x384xf32>
    %28 = arith.addf %22, %27 : vector<8x384xf32>
    %c0_27 = arith.constant 0 : index
    %c0_28 = arith.constant 0 : index
    %c20 = arith.constant 20 : index
    %29 = vector.load %arg1[%c0_27, %c0_28, %c20] : memref<1x4x432xf32, #tpu.memory_space<vmem>>, vector<1x4x384xf32>
    %30 = vector.shape_cast %29 : vector<1x4x384xf32> to vector<4x384xf32>
    %c5 = arith.constant 5 : index
    %c0_29 = arith.constant 0 : index
    %c0_30 = arith.constant 0 : index
    %31 = vector.load %arg2[%c5, %c0_29, %c0_30] : memref<9x8x4xf32, #tpu.memory_space<vmem>>, vector<1x8x4xf32>
    %32 = vector.shape_cast %31 : vector<1x8x4xf32> to vector<8x4xf32>
    %cst_31 = arith.constant dense<0.000000e+00> : vector<8x384xf32>
    %33 = tpu.matmul %32, %30, %cst_31 {dimension_numbers = #tpu.dot_dimension_numbers<[1], [0], [0], [1], [0, 0, 1, 1], [], []>} : vector<8x4xf32>, vector<4x384xf32>, vector<8x384xf32> -> vector<8x384xf32>
    %34 = arith.addf %28, %33 : vector<8x384xf32>
    %c0_32 = arith.constant 0 : index
    %c0_33 = arith.constant 0 : index
    %c36 = arith.constant 36 : index
    %35 = vector.load %arg1[%c0_32, %c0_33, %c36] : memref<1x4x432xf32, #tpu.memory_space<vmem>>, vector<1x4x384xf32>
    %36 = vector.shape_cast %35 : vector<1x4x384xf32> to vector<4x384xf32>
    %c6 = arith.constant 6 : index
    %c0_34 = arith.constant 0 : index
    %c0_35 = arith.constant 0 : index
    %37 = vector.load %arg2[%c6, %c0_34, %c0_35] : memref<9x8x4xf32, #tpu.memory_space<vmem>>, vector<1x8x4xf32>
    %38 = vector.shape_cast %37 : vector<1x8x4xf32> to vector<8x4xf32>
    %cst_36 = arith.constant dense<0.000000e+00> : vector<8x384xf32>
    %39 = tpu.matmul %38, %36, %cst_36 {dimension_numbers = #tpu.dot_dimension_numbers<[1], [0], [0], [1], [0, 0, 1, 1], [], []>} : vector<8x4xf32>, vector<4x384xf32>, vector<8x384xf32> -> vector<8x384xf32>
    %40 = arith.addf %34, %39 : vector<8x384xf32>
    %c0_37 = arith.constant 0 : index
    %c0_38 = arith.constant 0 : index
    %c37 = arith.constant 37 : index
    %41 = vector.load %arg1[%c0_37, %c0_38, %c37] : memref<1x4x432xf32, #tpu.memory_space<vmem>>, vector<1x4x384xf32>
    %42 = vector.shape_cast %41 : vector<1x4x384xf32> to vector<4x384xf32>
    %c7 = arith.constant 7 : index
    %c0_39 = arith.constant 0 : index
    %c0_40 = arith.constant 0 : index
    %43 = vector.load %arg2[%c7, %c0_39, %c0_40] : memref<9x8x4xf32, #tpu.memory_space<vmem>>, vector<1x8x4xf32>
    %44 = vector.shape_cast %43 : vector<1x8x4xf32> to vector<8x4xf32>
    %cst_41 = arith.constant dense<0.000000e+00> : vector<8x384xf32>
    %45 = tpu.matmul %44, %42, %cst_41 {dimension_numbers = #tpu.dot_dimension_numbers<[1], [0], [0], [1], [0, 0, 1, 1], [], []>} : vector<8x4xf32>, vector<4x384xf32>, vector<8x384xf32> -> vector<8x384xf32>
    %46 = arith.addf %40, %45 : vector<8x384xf32>
    %c0_42 = arith.constant 0 : index
    %c0_43 = arith.constant 0 : index
    %c38 = arith.constant 38 : index
    %47 = vector.load %arg1[%c0_42, %c0_43, %c38] : memref<1x4x432xf32, #tpu.memory_space<vmem>>, vector<1x4x384xf32>
    %48 = vector.shape_cast %47 : vector<1x4x384xf32> to vector<4x384xf32>
    %c8 = arith.constant 8 : index
    %c0_44 = arith.constant 0 : index
    %c0_45 = arith.constant 0 : index
    %49 = vector.load %arg2[%c8, %c0_44, %c0_45] : memref<9x8x4xf32, #tpu.memory_space<vmem>>, vector<1x8x4xf32>
    %50 = vector.shape_cast %49 : vector<1x8x4xf32> to vector<8x4xf32>
    %cst_46 = arith.constant dense<0.000000e+00> : vector<8x384xf32>
    %51 = tpu.matmul %50, %48, %cst_46 {dimension_numbers = #tpu.dot_dimension_numbers<[1], [0], [0], [1], [0, 0, 1, 1], [], []>} : vector<8x4xf32>, vector<4x384xf32>, vector<8x384xf32> -> vector<8x384xf32>
    %52 = arith.addf %46, %51 : vector<8x384xf32>
    %cst_47 = arith.constant 0.000000e+00 : f32
    %53 = vector.broadcast %cst_47 : f32 to vector<8x384xf32>
    %54 = arith.maximumf %52, %53 : vector<8x384xf32>
    %c0_48 = arith.constant 0 : index
    %c0_49 = arith.constant 0 : index
    %c0_50 = arith.constant 0 : index
    %55 = vector.load %arg3[%c0_48, %c0_49, %c0_50] : memref<1x8x384xf32, #tpu.memory_space<vmem>>, vector<1x8x384xf32>
    %56 = vector.shape_cast %55 : vector<1x8x384xf32> to vector<8x384xf32>
    %57 = vector.shape_cast %54 : vector<8x384xf32> to vector<1x8x384xf32>
    tpu.vector_store %arg3[%c0_48, %c0_49, %c0_50], %57 {strides = array<i32>} : memref<1x8x384xf32, #tpu.memory_space<vmem>>, vector<1x8x384xf32>,
    return
  }
  func.func @transform_0(%arg0: i32) -> (i32, i32, i32) {
    %c0_i32 = arith.constant 0 : i32
    %c0_i32_0 = arith.constant 0 : i32
    %c0_i32_1 = arith.constant 0 : i32
    return %arg0, %c0_i32, %c0_i32_0 : i32, i32, i32
  }
  func.func @transform_1(%arg0: i32) -> (i32, i32, i32) {
    %c0_i32 = arith.constant 0 : i32
    %c0_i32_0 = arith.constant 0 : i32
    %c0_i32_1 = arith.constant 0 : i32
    %c0_i32_2 = arith.constant 0 : i32
    return %c0_i32, %c0_i32_0, %c0_i32_1 : i32, i32, i32
  }
  func.func @transform_2(%arg0: i32) -> (i32, i32, i32) {
    %c0_i32 = arith.constant 0 : i32
    %c0_i32_0 = arith.constant 0 : i32
    %c0_i32_1 = arith.constant 0 : i32
    return %arg0, %c0_i32, %c0_i32_0 : i32, i32, i32
  }
}

</mosaic_0001>

<llo_original>
// kernel: tpu_custom_call.1
$region0: #{tpu_custom_call.1}
  #allocation0 [shape = 'u32[]', space=smem, size = 0x4, offset = 0x4, fixed_abs, tag = 'smem constant byte address 0x4 - core index']
  #allocation1 [shape = 'u32[144,128]{1,0:T(1,128)}', space=vmem, size = 0x12000, scoped, tag = 'internal scratch']
  %s0 = inlined_call_operand.vmem [shape: f32[2,4,432], index: 0, kind: input, shape index: {}]
  %s1 = inlined_call_operand.vmem [shape: f32[9,8,4], index: 1, kind: input, shape index: {}]
  %s2 = inlined_call_operand.hbm [shape: f32[2,8,384], index: 2, kind: output, shape index: {}]
  %s3 = sld [smem:[#allocation0]]
  $region41: #{tpu_custom_call.1} parent=0
    _
  %s5 = ssub.s32 1, %s3
  %s6 = scalar_select 0, %s5, %s3
  $region1: #{tpu_custom_call.1} parent=0
    #allocation2 [shape = 'u8[24576]{0}', space=vmem, size = 0x6000, scoped, tag = 'output window, operand 0']
    #allocation3 [shape = 's32[2]{0}', space=sflag, size = 0x8, scoped, tag = 'scoped memory for tpu_custom_call.1']
    %7 = vsyncpa [#allocation3], 0
    %s8 = scalar_lea.sflag [#allocation3], 1
    %9 = vsyncpa %s8, 0
    loop: start=0, step=1, limit=4
    $region2: #{tpu_custom_call.1} parent=1 // loop_pre_header
      _
    $region3: #{tpu_custom_call.1} parent=1 // loop_header
      %s11 = sphi 0, %s15
      %p12 = scmp.ge.s32.totalorder %s11, 4
      %s21 = sphi 0, %s23
      %s24 = sphi 0, %s21
      %s25 = sphi 0, %s24
      %s41 = sphi 0, %s25
      %s45 = sphi 0, %s45
      %s47 = sphi 0, %s45
      %s48 = sphi 0, %s47
      %s62 = sphi 0, %s48
      %s68 = sphi 0, %s70
      %s71 = sphi 0, %s68
      %s72 = sphi 0, %s71
      %s88 = sphi 0, %s72
    $region4: #{tpu_custom_call.1} parent=1 // loop_header_branch
      %14 = sbr.rel (%p12) target = $region8
    $region5: #{tpu_custom_call.1} parent=1 // loop_body
      %s16 = ssub.s32 %s11, 1
      %s17 = ssub.s32 %s11, 2
      %s18 = sadd.s32 %s11, 1
      %s19 = ssub.s32 %s11, %s18
      %p20 = scmp.eq.s32.totalorder %s19, 0
      %s22 = sadd.s32 %s21, 1
      %s23 = scalar_select %p20, %s21, %s22
      %p26 = pneg %p20
      %p27 = scmp.eq.s32.totalorder %s11, 1
      %p28 = por %p26, %p27
      %p29 = scmp.ne.s32.totalorder %s21, %s24
      %p30 = scmp.eq.s32.totalorder %s11, 0
      %p31 = por %p29, %p30
      %p32 = scmp.ne.s32.totalorder %s21, %s24
      %p33 = scmp.eq.s32.totalorder %s16, 1
      %p34 = por %p32, %p33
      %p35 = scmp.ne.s32.totalorder %s24, %s25
      %p36 = scmp.eq.s32.totalorder %s16, 0
      %p37 = por %p35, %p36
      %p38 = scmp.ne.s32.totalorder %s24, %s25
      %p39 = scmp.eq.s32.totalorder %s17, 1
      %p40 = por %p38, %p39
      %p42 = scmp.ne.s32.totalorder %s25, %s41
      %p43 = scmp.eq.s32.totalorder %s17, 0
      %p44 = por %p42, %p43
      %s46 = sadd.s32 %s45, 1
      %p49 = scmp.eq.s32.totalorder %s11, 1
      %p50 = scmp.ne.s32.totalorder %s45, %s47
      %p51 = scmp.eq.s32.totalorder %s11, 0
      %p52 = por %p50, %p51
      %p53 = scmp.ne.s32.totalorder %s45, %s47
      %p54 = scmp.eq.s32.totalorder %s16, 1
      %p55 = por %p53, %p54
      %p56 = scmp.ne.s32.totalorder %s47, %s48
      %p57 = scmp.eq.s32.totalorder %s16, 0
      %p58 = por %p56, %p57
      %p59 = scmp.ne.s32.totalorder %s47, %s48
      %p60 = scmp.eq.s32.totalorder %s17, 1
      %p61 = por %p59, %p60
      %p63 = scmp.ne.s32.totalorder %s48, %s62
      %p64 = scmp.eq.s32.totalorder %s17, 0
      %p65 = por %p63, %p64
      %s66 = ssub.s32 %s11, %s18
      %p67 = scmp.eq.s32.totalorder %s66, 0
      %s69 = sadd.s32 %s68, 1
      %s70 = scalar_select %p67, %s68, %s69
      %p73 = pneg %p67
      %p74 = scmp.eq.s32.totalorder %s11, 1
      %p75 = por %p73, %p74
      %p76 = scmp.ne.s32.totalorder %s68, %s71
      %p77 = scmp.eq.s32.totalorder %s11, 0
      %p78 = por %p76, %p77
      %p79 = scmp.ne.s32.totalorder %s68, %s71
      %p80 = scmp.eq.s32.totalorder %s16, 1
      %p81 = por %p79, %p80
      %p82 = scmp.ne.s32.totalorder %s71, %s72
      %p83 = scmp.eq.s32.totalorder %s16, 0
      %p84 = por %p82, %p83
      %p85 = scmp.ne.s32.totalorder %s71, %s72
      %p86 = scmp.eq.s32.totalorder %s17, 1
      %p87 = por %p85, %p86
      %p89 = scmp.ne.s32.totalorder %s72, %s88
      %p90 = scmp.eq.s32.totalorder %s17, 0
      %p91 = por %p89, %p90
      %p92 = scmp.le.s32.totalorder 1, %s11
      %p93 = scmp.lt.s32.totalorder %s11, 3
      %p94 = pnand %p92, %p93
      %p95 = pneg %p94
      // Predicated region
      $region9: #{tpu_custom_call.1} parent=5 // pred_check
        _
      $region10: #{tpu_custom_call.1} parent=5 // pred_check_branch
        %97 = sbr.rel (%p94) target = $region12
      $region11: #{tpu_custom_call.1} parent=5 // pred_region
        %s98 = ssub.s32 %s11, 1
        // Predicated region
        $region13: #{tpu_custom_call.1} parent=11 // pred_check
          %p99 = pneg %p58
        $region14: #{tpu_custom_call.1} parent=11 // pred_check_branch
          %101 = sbr.rel (%p99) target = $region16
        $region15: #{tpu_custom_call.1} parent=11 // pred_region
          _
        $region16: #{tpu_custom_call.1} parent=11 // pred_fallthru
          _
      $region12: #{tpu_custom_call.1} parent=5 // pred_fallthru
        _
      %p102 = scmp.lt.s32.totalorder %s11, 2
      // Predicated region
      $region17: #{tpu_custom_call.1} parent=5 // pred_check
        %p103 = pneg %p102
      $region18: #{tpu_custom_call.1} parent=5 // pred_check_branch
        %105 = sbr.rel (%p103) target = $region20
      $region19: #{tpu_custom_call.1} parent=5 // pred_region
        // Predicated region
        $region21: #{tpu_custom_call.1} parent=19 // pred_check
          %p106 = pneg %p31
        $region22: #{tpu_custom_call.1} parent=19 // pred_check_branch
          %108 = sbr.rel (%p106) target = $region24
        $region23: #{tpu_custom_call.1} parent=19 // pred_region
          %p109 = scmp.lt.s32.totalorder %s11, 1
          %s110 = scalar_select %p109, %s11, 1
          %s111 = smul.addr %s110, 4
          %s112 = smul.addr %s111, 4
          %s113 = scalar_lea.vmem %s0, %s112
        $region24: #{tpu_custom_call.1} parent=19 // pred_fallthru
          _
      $region20: #{tpu_custom_call.1} parent=5 // pred_fallthru
        _
      %p114 = scmp.le.s32.totalorder 1, %s11
      %p115 = scmp.lt.s32.totalorder %s11, 3
      %p116 = pnand %p114, %p115
      %p117 = pneg %p116
      // Predicated region
      $region25: #{tpu_custom_call.1} parent=5 // pred_check
        _
      $region26: #{tpu_custom_call.1} parent=5 // pred_check_branch
        %119 = sbr.rel (%p116) target = $region28
      $region27: #{tpu_custom_call.1} parent=5 // pred_region
        %s120 = ssub.s32 %s11, 1
        %p121 = scmp.lt.s32.totalorder %s16, 1
        %s122 = scalar_select %p121, %s16, 1
        %s123 = smul.addr %s122, 4
        %s124 = smul.addr %s123, 4
        %s125 = scalar_lea.vmem %s0, %s124
        %p126 = pneg %p37
        %p127 = pneg %p34
        %p128 = pneg %p58
        %p129 = pneg %p55
        %p130 = pneg %p84
        %p131 = pneg %p81
        %s132 = sand.u32 %s71, 1
        %s133 = scalar_lea.sflag [#allocation3], %s132
        %s134 = sand.u32 %s71, 1
        %s135 = smul.addr %s134, 24
        %s136 = scalar_lea.vmem [#allocation2], %s135
        %p137 = scmp.lt.s32.totalorder %s16, 1
        %s138 = scalar_select %p137, %s16, 1
        %s139 = smul.addr %s138, 4
        %s140 = smul.addr %s139, 4
        %s141 = scalar_lea.vmem %s0, %s140
        %v142 = vld [vmem:[%s141] sm:$0xff]
        %v143 = vld [vmem:[%s141 + $0x8] sm:$0xf]
        %v144 = vld [vmem:[%s1] sm:$0xff]
        %v145 = vld [vmem:[%s141 + $0x8] sm:$0xff]
        %s146 = scalar_lea.vmem %s1, 8
        %v147 = vld [vmem:[%s146] sm:$0xff]
        %v150 = vcombine.high %v142, %v142
        %v151 = vcombine.high %v145, %v145
        %152 = vrot.lane.b32.xlu0 %v142, 127
        %v153 = vpop.permute.xlu0 %152
        %154 = vrot.lane.b32.xlu0 %v150, 127
        %v155 = vpop.permute.xlu0 %154
        %156 = vrot.lane.b32.xlu0 %v145, 127
        %v157 = vpop.permute.xlu0 %156
        %158 = vrot.lane.b32.xlu0 %v151, 127
        %v159 = vpop.permute.xlu0 %158
        %vm160 = vcmask 1039360
        %v161 = vsel %vm160, %v153, %v155
        %v162 = vsel %vm160, %v155, %v157
        %v163 = vsel %vm160, %v157, %v159
        %vm164 = vcmask 31744
        %v166 = vsel %vm164, %v147, 0
        %vm168 = vcmask 1043456
        %v169 = vsel %vm168, %v161, 0
        %v171 = vsel %vm168, %v162, 0
        %v173 = vsel %vm168, %v163, 0
        %175 = vmatprep.subr.mxu0 %v171
        %176 = vmatpush1.msra.mxu0 %v169
        %177 = vmatprep.subr.mxu0 0.0
        %178 = vmatpush1.msra.mxu0 0.0
        %179 = vmatprep.subr.mxu0 0.0
        %180 = vmatpush1.msra.mxu0 0.0
        %181 = vmatprep.subr.mxu0 0.0
        %182 = vmatpush1.msra.mxu0 0.0
        %183 = vmatprep.subr.mxu0 0.0
        %184 = vmatpush1.msra.mxu0 0.0
        %185 = vmatprep.subr.mxu0 0.0
        %186 = vmatpush1.msra.mxu0 0.0
        %187 = vmatprep.subr.mxu0 0.0
        %188 = vmatpush1.msra.mxu0 0.0
        %189 = vmatprep.subr.mxu0 0.0
        %190 = vmatpush1.msra.mxu0 0.0
        %191 = vmatprep.subr.mxu0 0.0
        %192 = vmatpush1.msra.mxu0 0.0
        %193 = vmatprep.subr.mxu0 0.0
        %194 = vmatpush1.msra.mxu0 0.0
        %195 = vmatprep.subr.mxu0 0.0
        %196 = vmatpush1.msra.mxu0 0.0
        %197 = vmatprep.subr.mxu0 0.0
        %198 = vmatpush1.msra.mxu0 0.0
        %199 = vmatprep.subr.mxu0 0.0
        %200 = vmatpush1.msra.mxu0 0.0
        %201 = vmatprep.subr.mxu0 0.0
        %202 = vmatpush1.msra.mxu0 0.0
        %203 = vmatprep.subr.mxu0 0.0
        %204 = vmatpush1.msra.mxu0 0.0
        %205 = vmatprep.subr.mxu0 0.0
        %206 = vmatpush1.msra.mxu0 0.0
        %207 = vmatprep.subr.mxu0 0.0
        %208 = vmatpush1.msra.mxu0 0.0
        %209 = vmatprep.subr.mxu0 0.0
        %210 = vmatpush1.msra.mxu0 0.0
        %211 = vmatprep.subr.mxu0 0.0
        %212 = vmatpush1.msra.mxu0 0.0
        %213 = vmatprep.subr.mxu0 0.0
        %214 = vmatpush1.msra.mxu0 0.0
        %215 = vmatprep.subr.mxu0 0.0
        %216 = vmatpush1.msra.mxu0 0.0
        %217 = vmatprep.subr.mxu0 0.0
        %218 = vmatpush1.msra.mxu0 0.0
        %219 = vmatprep.subr.mxu0 0.0
        %220 = vmatpush1.msra.mxu0 0.0
        %221 = vmatprep.subr.mxu0 0.0
        %222 = vmatpush1.msra.mxu0 0.0
        %223 = vmatprep.subr.mxu0 0.0
        %224 = vmatpush1.msra.mxu0 0.0
        %225 = vmatprep.subr.mxu0 0.0
        %226 = vmatpush1.msra.mxu0 0.0
        %227 = vmatprep.subr.mxu0 0.0
        %228 = vmatpush1.msra.mxu0 0.0
        %229 = vmatprep.subr.mxu0 0.0
        %230 = vmatpush1.msra.mxu0 0.0
        %231 = vmatprep.subr.mxu0 0.0
        %232 = vmatpush1.msra.mxu0 0.0
        %233 = vmatprep.subr.mxu0 0.0
        %234 = vmatpush1.msra.mxu0 0.0
        %235 = vmatprep.subr.mxu0 0.0
        %236 = vmatpush1.msra.mxu0 0.0
        %237 = vmatprep.subr.mxu0 0.0
        %238 = vmatpush1.msra.mxu0 0.0
        %239 = vmatprep.mubr.f32.mxu0 0.0
        %240 = vmatmul.mubr.f32.gmra.mrb[0].mxu0 %v166
        %v241 = vpop.f32.mrb[0].mxu0
        %v242 = vadd.f32 0.0, %v241
        %v243 = vpop.f32.mrb[0].mxu0
        %v244 = vadd.f32 0.0, %v243
        %245 = vdwg.mxu0
        %246 = vmatprep.subr.mxu0 0.0
        %247 = vmatpush1.msra.mxu0 %v173
        %248 = vmatprep.subr.mxu0 0.0
        %249 = vmatpush1.msra.mxu0 0.0
        %250 = vmatprep.subr.mxu0 0.0
        %251 = vmatpush1.msra.mxu0 0.0
        %252 = vmatprep.subr.mxu0 0.0
        %253 = vmatpush1.msra.mxu0 0.0
        %254 = vmatprep.subr.mxu0 0.0
        %255 = vmatpush1.msra.mxu0 0.0
        %256 = vmatprep.subr.mxu0 0.0
        %257 = vmatpush1.msra.mxu0 0.0
        %258 = vmatprep.subr.mxu0 0.0
        %259 = vmatpush1.msra.mxu0 0.0
        %260 = vmatprep.subr.mxu0 0.0
        %261 = vmatpush1.msra.mxu0 0.0
        %262 = vmatprep.subr.mxu0 0.0
        %263 = vmatpush1.msra.mxu0 0.0
        %264 = vmatprep.subr.mxu0 0.0
        %265 = vmatpush1.msra.mxu0 0.0
        %266 = vmatprep.subr.mxu0 0.0
        %267 = vmatpush1.msra.mxu0 0.0
        %268 = vmatprep.subr.mxu0 0.0
        %269 = vmatpush1.msra.mxu0 0.0
        %270 = vmatprep.subr.mxu0 0.0
        %271 = vmatpush1.msra.mxu0 0.0
        %272 = vmatprep.subr.mxu0 0.0
        %273 = vmatpush1.msra.mxu0 0.0
        %274 = vmatprep.subr.mxu0 0.0
        %275 = vmatpush1.msra.mxu0 0.0
        %276 = vmatprep.subr.mxu0 0.0
        %277 = vmatpush1.msra.mxu0 0.0
        %278 = vmatprep.subr.mxu0 0.0
        %279 = vmatpush1.msra.mxu0 0.0
        %280 = vmatprep.subr.mxu0 0.0
        %281 = vmatpush1.msra.mxu0 0.0
        %282 = vmatprep.subr.mxu0 0.0
        %283 = vmatpush1.msra.mxu0 0.0
        %284 = vmatprep.subr.mxu0 0.0
        %285 = vmatpush1.msra.mxu0 0.0
        %286 = vmatprep.subr.mxu0 0.0
        %287 = vmatpush1.msra.mxu0 0.0
        %288 = vmatprep.subr.mxu0 0.0
        %289 = vmatpush1.msra.mxu0 0.0
        %290 = vmatprep.subr.mxu0 0.0
        %291 = vmatpush1.msra.mxu0 0.0
        %292 = vmatprep.subr.mxu0 0.0
        %293 = vmatpush1.msra.mxu0 0.0
        %294 = vmatprep.subr.mxu0 0.0
        %295 = vmatpush1.msra.mxu0 0.0
        %296 = vmatprep.subr.mxu0 0.0
        %297 = vmatpush1.msra.mxu0 0.0
        %298 = vmatprep.subr.mxu0 0.0
        %299 = vmatpush1.msra.mxu0 0.0
        %300 = vmatprep.subr.mxu0 0.0
        %301 = vmatpush1.msra.mxu0 0.0
        %302 = vmatprep.subr.mxu0 0.0
        %303 = vmatpush1.msra.mxu0 0.0
        %304 = vmatprep.subr.mxu0 0.0
        %305 = vmatpush1.msra.mxu0 0.0
        %306 = vmatprep.subr.mxu0 0.0
        %307 = vmatpush1.msra.mxu0 0.0
        %308 = vmatprep.subr.mxu0 0.0
        %309 = vmatpush1.msra.mxu0 0.0
        %310 = vmatprep.mubr.f32.mxu0 0.0
        %311 = vmatmul.mubr.f32.gmra.mrb[0].mxu0 %v166
        %v312 = vpop.f32.mrb[0].mxu0
        %v313 = vadd.f32 0.0, %v312
        %v314 = vpop.f32.mrb[0].mxu0
        %315 = vdwg.mxu0
        %v318 = vsel %vm164, %v144, 0
        %v320 = vsel %vm168, %v142, 0
        %v322 = vsel %vm168, %v150, 0
        %v324 = vsel %vm168, %v143, 0
        %326 = vmatprep.subr.mxu0 %v322
        %327 = vmatpush1.msra.mxu0 %v320
        %328 = vmatprep.subr.mxu0 0.0
        %329 = vmatpush1.msra.mxu0 0.0
        %330 = vmatprep.subr.mxu0 0.0
        %331 = vmatpush1.msra.mxu0 0.0
        %332 = vmatprep.subr.mxu0 0.0
        %333 = vmatpush1.msra.mxu0 0.0
        %334 = vmatprep.subr.mxu0 0.0
        %335 = vmatpush1.msra.mxu0 0.0
        %336 = vmatprep.subr.mxu0 0.0
        %337 = vmatpush1.msra.mxu0 0.0
        %338 = vmatprep.subr.mxu0 0.0
        %339 = vmatpush1.msra.mxu0 0.0
        %340 = vmatprep.subr.mxu0 0.0
        %341 = vmatpush1.msra.mxu0 0.0
        %342 = vmatprep.subr.mxu0 0.0
        %343 = vmatpush1.msra.mxu0 0.0
        %344 = vmatprep.subr.mxu0 0.0
        %345 = vmatpush1.msra.mxu0 0.0
        %346 = vmatprep.subr.mxu0 0.0
        %347 = vmatpush1.msra.mxu0 0.0
        %348 = vmatprep.subr.mxu0 0.0
        %349 = vmatpush1.msra.mxu0 0.0
        %350 = vmatprep.subr.mxu0 0.0
        %351 = vmatpush1.msra.mxu0 0.0
        %352 = vmatprep.subr.mxu0 0.0
        %353 = vmatpush1.msra.mxu0 0.0
        %354 = vmatprep.subr.mxu0 0.0
        %355 = vmatpush1.msra.mxu0 0.0
        %356 = vmatprep.subr.mxu0 0.0
        %357 = vmatpush1.msra.mxu0 0.0
        %358 = vmatprep.subr.mxu0 0.0
        %359 = vmatpush1.msra.mxu0 0.0
        %360 = vmatprep.subr.mxu0 0.0
        %361 = vmatpush1.msra.mxu0 0.0
        %362 = vmatprep.subr.mxu0 0.0
        %363 = vmatpush1.msra.mxu0 0.0
        %364 = vmatprep.subr.mxu0 0.0
        %365 = vmatpush1.msra.mxu0 0.0
        %366 = vmatprep.subr.mxu0 0.0
        %367 = vmatpush1.msra.mxu0 0.0
        %368 = vmatprep.subr.mxu0 0.0
        %369 = vmatpush1.msra.mxu0 0.0
        %370 = vmatprep.subr.mxu0 0.0
        %371 = vmatpush1.msra.mxu0 0.0
        %372 = vmatprep.subr.mxu0 0.0
        %373 = vmatpush1.msra.mxu0 0.0
        %374 = vmatprep.subr.mxu0 0.0
        %375 = vmatpush1.msra.mxu0 0.0
        %376 = vmatprep.subr.mxu0 0.0
        %377 = vmatpush1.msra.mxu0 0.0
        %378 = vmatprep.subr.mxu0 0.0
        %379 = vmatpush1.msra.mxu0 0.0
        %380 = vmatprep.subr.mxu0 0.0
        %381 = vmatpush1.msra.mxu0 0.0
        %382 = vmatprep.subr.mxu0 0.0
        %383 = vmatpush1.msra.mxu0 0.0
        %384 = vmatprep.subr.mxu0 0.0
        %385 = vmatpush1.msra.mxu0 0.0
        %386 = vmatprep.subr.mxu0 0.0
        %387 = vmatpush1.msra.mxu0 0.0
        %388 = vmatprep.subr.mxu0 0.0
        %389 = vmatpush1.msra.mxu0 0.0
        %390 = vmatprep.mubr.f32.mxu0 0.0
        %391 = vmatmul.mubr.f32.gmra.mrb[0].mxu0 %v318
        %v392 = vpop.f32.mrb[0].mxu0
        %v393 = vadd.f32 %v242, %v392
        %v394 = vpop.f32.mrb[0].mxu0
        %v395 = vadd.f32 %v244, %v394
        %396 = vdwg.mxu0
        %397 = vmatprep.subr.mxu0 0.0
        %398 = vmatpush1.msra.mxu0 %v324
        %399 = vmatprep.subr.mxu0 0.0
        %400 = vmatpush1.msra.mxu0 0.0
        %401 = vmatprep.subr.mxu0 0.0
        %402 = vmatpush1.msra.mxu0 0.0
        %403 = vmatprep.subr.mxu0 0.0
        %404 = vmatpush1.msra.mxu0 0.0
        %405 = vmatprep.subr.mxu0 0.0
        %406 = vmatpush1.msra.mxu0 0.0
        %407 = vmatprep.subr.mxu0 0.0
        %408 = vmatpush1.msra.mxu0 0.0
        %409 = vmatprep.subr.mxu0 0.0
        %410 = vmatpush1.msra.mxu0 0.0
        %411 = vmatprep.subr.mxu0 0.0
        %412 = vmatpush1.msra.mxu0 0.0
        %413 = vmatprep.subr.mxu0 0.0
        %414 = vmatpush1.msra.mxu0 0.0
        %415 = vmatprep.subr.mxu0 0.0
        %416 = vmatpush1.msra.mxu0 0.0
        %417 = vmatprep.subr.mxu0 0.0
        %418 = vmatpush1.msra.mxu0 0.0
        %419 = vmatprep.subr.mxu0 0.0
        %420 = vmatpush1.msra.mxu0 0.0
        %421 = vmatprep.subr.mxu0 0.0
        %422 = vmatpush1.msra.mxu0 0.0
        %423 = vmatprep.subr.mxu0 0.0
        %424 = vmatpush1.msra.mxu0 0.0
        %425 = vmatprep.subr.mxu0 0.0
        %426 = vmatpush1.msra.mxu0 0.0
        %427 = vmatprep.subr.mxu0 0.0
        %428 = vmatpush1.msra.mxu0 0.0
        %429 = vmatprep.subr.mxu0 0.0
        %430 = vmatpush1.msra.mxu0 0.0
        %431 = vmatprep.subr.mxu0 0.0
        %432 = vmatpush1.msra.mxu0 0.0
        %433 = vmatprep.subr.mxu0 0.0
        %434 = vmatpush1.msra.mxu0 0.0
        %435 = vmatprep.subr.mxu0 0.0
        %436 = vmatpush1.msra.mxu0 0.0
        %437 = vmatprep.subr.mxu0 0.0
        %438 = vmatpush1.msra.mxu0 0.0
        %439 = vmatprep.subr.mxu0 0.0
        %440 = vmatpush1.msra.mxu0 0.0
        %441 = vmatprep.subr.mxu0 0.0
        %442 = vmatpush1.msra.mxu0 0.0
        %443 = vmatprep.subr.mxu0 0.0
        %444 = vmatpush1.msra.mxu0 0.0
        %445 = vmatprep.subr.mxu0 0.0
        %446 = vmatpush1.msra.mxu0 0.0
        %447 = vmatprep.subr.mxu0 0.0
        %448 = vmatpush1.msra.mxu0 0.0
        %449 = vmatprep.subr.mxu0 0.0
        %450 = vmatpush1.msra.mxu0 0.0
        %451 = vmatprep.subr.mxu0 0.0
        %452 = vmatpush1.msra.mxu0 0.0
        %453 = vmatprep.subr.mxu0 0.0
        %454 = vmatpush1.msra.mxu0 0.0
        %455 = vmatprep.subr.mxu0 0.0
        %456 = vmatpush1.msra.mxu0 0.0
        %457 = vmatprep.subr.mxu0 0.0
        %458 = vmatpush1.msra.mxu0 0.0
        %459 = vmatprep.subr.mxu0 0.0
        %460 = vmatpush1.msra.mxu0 0.0
        %461 = vmatprep.mubr.f32.mxu0 0.0
        %462 = vmatmul.mubr.f32.gmra.mrb[0].mxu0 %v318
        %v463 = vpop.f32.mrb[0].mxu0
        %v464 = vadd.f32 %v313, %v463
        %v465 = vpop.f32.mrb[0].mxu0
        %466 = vdwg.mxu0
        %v467 = vld [vmem:[%s141] sm:$0xff]
        %v468 = vld [vmem:[%s141 + $0x8] sm:$0xff]
        %s469 = scalar_lea.vmem %s1, 16
        %v470 = vld [vmem:[%s469] sm:$0xff]
        %v473 = vcombine.high %v467, %v467
        %v474 = vcombine.high %v468, %v468
        %475 = vrot.lane.b32.xlu0 %v467, 126
        %v476 = vpop.permute.xlu0 %475
        %477 = vrot.lane.b32.xlu0 %v473, 126
        %v478 = vpop.permute.xlu0 %477
        %479 = vrot.lane.b32.xlu0 %v468, 126
        %v480 = vpop.permute.xlu0 %479
        %481 = vrot.lane.b32.xlu0 %v474, 126
        %v482 = vpop.permute.xlu0 %481
        %vm483 = vcmask 1031168
        %v484 = vsel %vm483, %v476, %v478
        %v485 = vsel %vm483, %v478, %v480
        %v486 = vsel %vm483, %v480, %v482
        %v488 = vsel %vm164, %v470, 0
        %v490 = vsel %vm168, %v484, 0
        %v492 = vsel %vm168, %v485, 0
        %v494 = vsel %vm168, %v486, 0
        %496 = vmatprep.subr.mxu0 %v492
        %497 = vmatpush1.msra.mxu0 %v490
        %498 = vmatprep.subr.mxu0 0.0
        %499 = vmatpush1.msra.mxu0 0.0
        %500 = vmatprep.subr.mxu0 0.0
        %501 = vmatpush1.msra.mxu0 0.0
        %502 = vmatprep.subr.mxu0 0.0
        %503 = vmatpush1.msra.mxu0 0.0
        %504 = vmatprep.subr.mxu0 0.0
        %505 = vmatpush1.msra.mxu0 0.0
        %506 = vmatprep.subr.mxu0 0.0
        %507 = vmatpush1.msra.mxu0 0.0
        %508 = vmatprep.subr.mxu0 0.0
        %509 = vmatpush1.msra.mxu0 0.0
        %510 = vmatprep.subr.mxu0 0.0
        %511 = vmatpush1.msra.mxu0 0.0
        %512 = vmatprep.subr.mxu0 0.0
        %513 = vmatpush1.msra.mxu0 0.0
        %514 = vmatprep.subr.mxu0 0.0
        %515 = vmatpush1.msra.mxu0 0.0
        %516 = vmatprep.subr.mxu0 0.0
        %517 = vmatpush1.msra.mxu0 0.0
        %518 = vmatprep.subr.mxu0 0.0
        %519 = vmatpush1.msra.mxu0 0.0
        %520 = vmatprep.subr.mxu0 0.0
        %521 = vmatpush1.msra.mxu0 0.0
        %522 = vmatprep.subr.mxu0 0.0
        %523 = vmatpush1.msra.mxu0 0.0
        %524 = vmatprep.subr.mxu0 0.0
        %525 = vmatpush1.msra.mxu0 0.0
        %526 = vmatprep.subr.mxu0 0.0
        %527 = vmatpush1.msra.mxu0 0.0
        %528 = vmatprep.subr.mxu0 0.0
        %529 = vmatpush1.msra.mxu0 0.0
        %530 = vmatprep.subr.mxu0 0.0
        %531 = vmatpush1.msra.mxu0 0.0
        %532 = vmatprep.subr.mxu0 0.0
        %533 = vmatpush1.msra.mxu0 0.0
        %534 = vmatprep.subr.mxu0 0.0
        %535 = vmatpush1.msra.mxu0 0.0
        %536 = vmatprep.subr.mxu0 0.0
        %537 = vmatpush1.msra.mxu0 0.0
        %538 = vmatprep.subr.mxu0 0.0
        %539 = vmatpush1.msra.mxu0 0.0
        %540 = vmatprep.subr.mxu0 0.0
        %541 = vmatpush1.msra.mxu0 0.0
        %542 = vmatprep.subr.mxu0 0.0
        %543 = vmatpush1.msra.mxu0 0.0
        %544 = vmatprep.subr.mxu0 0.0
        %545 = vmatpush1.msra.mxu0 0.0
        %546 = vmatprep.subr.mxu0 0.0
        %547 = vmatpush1.msra.mxu0 0.0
        %548 = vmatprep.subr.mxu0 0.0
        %549 = vmatpush1.msra.mxu0 0.0
        %550 = vmatprep.subr.mxu0 0.0
        %551 = vmatpush1.msra.mxu0 0.0
        %552 = vmatprep.subr.mxu0 0.0
        %553 = vmatpush1.msra.mxu0 0.0
        %554 = vmatprep.subr.mxu0 0.0
        %555 = vmatpush1.msra.mxu0 0.0
        %556 = vmatprep.subr.mxu0 0.0
        %557 = vmatpush1.msra.mxu0 0.0
        %558 = vmatprep.subr.mxu0 0.0
        %559 = vmatpush1.msra.mxu0 0.0
        %560 = vmatprep.mubr.f32.mxu0 0.0
        %561 = vmatmul.mubr.f32.gmra.mrb[0].mxu0 %v488
        %v562 = vpop.f32.mrb[0].mxu0
        %v563 = vadd.f32 0.0, %v562
        %v564 = vpop.f32.mrb[0].mxu0
        %v565 = vadd.f32 0.0, %v564
        %566 = vdwg.mxu0
        %567 = vmatprep.subr.mxu0 0.0
        %568 = vmatpush1.msra.mxu0 %v494
        %569 = vmatprep.subr.mxu0 0.0
        %570 = vmatpush1.msra.mxu0 0.0
        %571 = vmatprep.subr.mxu0 0.0
        %572 = vmatpush1.msra.mxu0 0.0
        %573 = vmatprep.subr.mxu0 0.0
        %574 = vmatpush1.msra.mxu0 0.0
        %575 = vmatprep.subr.mxu0 0.0
        %576 = vmatpush1.msra.mxu0 0.0
        %577 = vmatprep.subr.mxu0 0.0
        %578 = vmatpush1.msra.mxu0 0.0
        %579 = vmatprep.subr.mxu0 0.0
        %580 = vmatpush1.msra.mxu0 0.0
        %581 = vmatprep.subr.mxu0 0.0
        %582 = vmatpush1.msra.mxu0 0.0
        %583 = vmatprep.subr.mxu0 0.0
        %584 = vmatpush1.msra.mxu0 0.0
        %585 = vmatprep.subr.mxu0 0.0
        %586 = vmatpush1.msra.mxu0 0.0
        %587 = vmatprep.subr.mxu0 0.0
        %588 = vmatpush1.msra.mxu0 0.0
        %589 = vmatprep.subr.mxu0 0.0
        %590 = vmatpush1.msra.mxu0 0.0
        %591 = vmatprep.subr.mxu0 0.0
        %592 = vmatpush1.msra.mxu0 0.0
        %593 = vmatprep.subr.mxu0 0.0
        %594 = vmatpush1.msra.mxu0 0.0
        %595 = vmatprep.subr.mxu0 0.0
        %596 = vmatpush1.msra.mxu0 0.0
        %597 = vmatprep.subr.mxu0 0.0
        %598 = vmatpush1.msra.mxu0 0.0
        %599 = vmatprep.subr.mxu0 0.0
        %600 = vmatpush1.msra.mxu0 0.0
        %601 = vmatprep.subr.mxu0 0.0
        %602 = vmatpush1.msra.mxu0 0.0
        %603 = vmatprep.subr.mxu0 0.0
        %604 = vmatpush1.msra.mxu0 0.0
        %605 = vmatprep.subr.mxu0 0.0
        %606 = vmatpush1.msra.mxu0 0.0
        %607 = vmatprep.subr.mxu0 0.0
        %608 = vmatpush1.msra.mxu0 0.0
        %609 = vmatprep.subr.mxu0 0.0
        %610 = vmatpush1.msra.mxu0 0.0
        %611 = vmatprep.subr.mxu0 0.0
        %612 = vmatpush1.msra.mxu0 0.0
        %613 = vmatprep.subr.mxu0 0.0
        %614 = vmatpush1.msra.mxu0 0.0
        %615 = vmatprep.subr.mxu0 0.0
        %616 = vmatpush1.msra.mxu0 0.0
        %617 = vmatprep.subr.mxu0 0.0
        %618 = vmatpush1.msra.mxu0 0.0
        %619 = vmatprep.subr.mxu0 0.0
        %620 = vmatpush1.msra.mxu0 0.0
        %621 = vmatprep.subr.mxu0 0.0
        %622 = vmatpush1.msra.mxu0 0.0
        %623 = vmatprep.subr.mxu0 0.0
        %624 = vmatpush1.msra.mxu0 0.0
        %625 = vmatprep.subr.mxu0 0.0
        %626 = vmatpush1.msra.mxu0 0.0
        %627 = vmatprep.subr.mxu0 0.0
        %628 = vmatpush1.msra.mxu0 0.0
        %629 = vmatprep.subr.mxu0 0.0
        %630 = vmatpush1.msra.mxu0 0.0
        %631 = vmatprep.mubr.f32.mxu0 0.0
        %632 = vmatmul.mubr.f32.gmra.mrb[0].mxu0 %v488
        %v633 = vpop.f32.mrb[0].mxu0
        %v634 = vadd.f32 0.0, %v633
        %v635 = vpop.f32.mrb[0].mxu0
        %636 = vdwg.mxu0
        %v637 = vadd.f32 %v393, %v563
        %v638 = vadd.f32 %v395, %v565
        %v639 = vadd.f32 %v464, %v634
        %v640 = vld [vmem:[%s141] sm:$0xff]
        %v641 = vld [vmem:[%s141 + $0x8] sm:$0xff]
        %s642 = scalar_lea.vmem %s1, 24
        %v643 = vld [vmem:[%s642] sm:$0xff]
        %v646 = vcombine.high %v640, %v640
        %v647 = vcombine.high %v641, %v641
        %648 = vrot.lane.b32.xlu0 %v640, 110
        %v649 = vpop.permute.xlu0 %648
        %650 = vrot.lane.b32.xlu0 %v646, 110
        %v651 = vpop.permute.xlu0 %650
        %652 = vrot.lane.b32.xlu0 %v641, 110
        %v653 = vpop.permute.xlu0 %652
        %654 = vrot.lane.b32.xlu0 %v647, 110
        %v655 = vpop.permute.xlu0 %654
        %vm656 = vcmask 900096
        %v657 = vsel %vm656, %v649, %v651
        %v658 = vsel %vm656, %v651, %v653
        %v659 = vsel %vm656, %v653, %v655
        %v661 = vsel %vm164, %v643, 0
        %v663 = vsel %vm168, %v657, 0
        %v665 = vsel %vm168, %v658, 0
        %v667 = vsel %vm168, %v659, 0
        %669 = vmatprep.subr.mxu0 %v665
        %670 = vmatpush1.msra.mxu0 %v663
        %671 = vmatprep.subr.mxu0 0.0
        %672 = vmatpush1.msra.mxu0 0.0
        %673 = vmatprep.subr.mxu0 0.0
        %674 = vmatpush1.msra.mxu0 0.0
        %675 = vmatprep.subr.mxu0 0.0
        %676 = vmatpush1.msra.mxu0 0.0
        %677 = vmatprep.subr.mxu0 0.0
        %678 = vmatpush1.msra.mxu0 0.0
        %679 = vmatprep.subr.mxu0 0.0
        %680 = vmatpush1.msra.mxu0 0.0
        %681 = vmatprep.subr.mxu0 0.0
        %682 = vmatpush1.msra.mxu0 0.0
        %683 = vmatprep.subr.mxu0 0.0
        %684 = vmatpush1.msra.mxu0 0.0
        %685 = vmatprep.subr.mxu0 0.0
        %686 = vmatpush1.msra.mxu0 0.0
        %687 = vmatprep.subr.mxu0 0.0
        %688 = vmatpush1.msra.mxu0 0.0
        %689 = vmatprep.subr.mxu0 0.0
        %690 = vmatpush1.msra.mxu0 0.0
        %691 = vmatprep.subr.mxu0 0.0
        %692 = vmatpush1.msra.mxu0 0.0
        %693 = vmatprep.subr.mxu0 0.0
        %694 = vmatpush1.msra.mxu0 0.0
        %695 = vmatprep.subr.mxu0 0.0
        %696 = vmatpush1.msra.mxu0 0.0
        %697 = vmatprep.subr.mxu0 0.0
        %698 = vmatpush1.msra.mxu0 0.0
        %699 = vmatprep.subr.mxu0 0.0
        %700 = vmatpush1.msra.mxu0 0.0
        %701 = vmatprep.subr.mxu0 0.0
        %702 = vmatpush1.msra.mxu0 0.0
        %703 = vmatprep.subr.mxu0 0.0
        %704 = vmatpush1.msra.mxu0 0.0
        %705 = vmatprep.subr.mxu0 0.0
        %706 = vmatpush1.msra.mxu0 0.0
        %707 = vmatprep.subr.mxu0 0.0
        %708 = vmatpush1.msra.mxu0 0.0
        %709 = vmatprep.subr.mxu0 0.0
        %710 = vmatpush1.msra.mxu0 0.0
        %711 = vmatprep.subr.mxu0 0.0
        %712 = vmatpush1.msra.mxu0 0.0
        %713 = vmatprep.subr.mxu0 0.0
        %714 = vmatpush1.msra.mxu0 0.0
        %715 = vmatprep.subr.mxu0 0.0
        %716 = vmatpush1.msra.mxu0 0.0
        %717 = vmatprep.subr.mxu0 0.0
        %718 = vmatpush1.msra.mxu0 0.0
        %719 = vmatprep.subr.mxu0 0.0
        %720 = vmatpush1.msra.mxu0 0.0
        %721 = vmatprep.subr.mxu0 0.0
        %722 = vmatpush1.msra.mxu0 0.0
        %723 = vmatprep.subr.mxu0 0.0
        %724 = vmatpush1.msra.mxu0 0.0
        %725 = vmatprep.subr.mxu0 0.0
        %726 = vmatpush1.msra.mxu0 0.0
        %727 = vmatprep.subr.mxu0 0.0
        %728 = vmatpush1.msra.mxu0 0.0
        %729 = vmatprep.subr.mxu0 0.0
        %730 = vmatpush1.msra.mxu0 0.0
        %731 = vmatprep.subr.mxu0 0.0
        %732 = vmatpush1.msra.mxu0 0.0
        %733 = vmatprep.mubr.f32.mxu0 0.0
        %734 = vmatmul.mubr.f32.gmra.mrb[0].mxu0 %v661
        %v735 = vpop.f32.mrb[0].mxu0
        %v736 = vadd.f32 0.0, %v735
        %v737 = vpop.f32.mrb[0].mxu0
        %v738 = vadd.f32 0.0, %v737
        %739 = vdwg.mxu0
        %740 = vmatprep.subr.mxu0 0.0
        %741 = vmatpush1.msra.mxu0 %v667
        %742 = vmatprep.subr.mxu0 0.0
        %743 = vmatpush1.msra.mxu0 0.0
        %744 = vmatprep.subr.mxu0 0.0
        %745 = vmatpush1.msra.mxu0 0.0
        %746 = vmatprep.subr.mxu0 0.0
        %747 = vmatpush1.msra.mxu0 0.0
        %748 = vmatprep.subr.mxu0 0.0
        %749 = vmatpush1.msra.mxu0 0.0
        %750 = vmatprep.subr.mxu0 0.0
        %751 = vmatpush1.msra.mxu0 0.0
        %752 = vmatprep.subr.mxu0 0.0
        %753 = vmatpush1.msra.mxu0 0.0
        %754 = vmatprep.subr.mxu0 0.0
        %755 = vmatpush1.msra.mxu0 0.0
        %756 = vmatprep.subr.mxu0 0.0
        %757 = vmatpush1.msra.mxu0 0.0
        %758 = vmatprep.subr.mxu0 0.0
        %759 = vmatpush1.msra.mxu0 0.0
        %760 = vmatprep.subr.mxu0 0.0
        %761 = vmatpush1.msra.mxu0 0.0
        %762 = vmatprep.subr.mxu0 0.0
        %763 = vmatpush1.msra.mxu0 0.0
        %764 = vmatprep.subr.mxu0 0.0
        %765 = vmatpush1.msra.mxu0 0.0
        %766 = vmatprep.subr.mxu0 0.0
        %767 = vmatpush1.msra.mxu0 0.0
        %768 = vmatprep.subr.mxu0 0.0
        %769 = vmatpush1.msra.mxu0 0.0
        %770 = vmatprep.subr.mxu0 0.0
        %771 = vmatpush1.msra.mxu0 0.0
        %772 = vmatprep.subr.mxu0 0.0
        %773 = vmatpush1.msra.mxu0 0.0
        %774 = vmatprep.subr.mxu0 0.0
        %775 = vmatpush1.msra.mxu0 0.0
        %776 = vmatprep.subr.mxu0 0.0
        %777 = vmatpush1.msra.mxu0 0.0
        %778 = vmatprep.subr.mxu0 0.0
        %779 = vmatpush1.msra.mxu0 0.0
        %780 = vmatprep.subr.mxu0 0.0
        %781 = vmatpush1.msra.mxu0 0.0
        %782 = vmatprep.subr.mxu0 0.0
        %783 = vmatpush1.msra.mxu0 0.0
        %784 = vmatprep.subr.mxu0 0.0
        %785 = vmatpush1.msra.mxu0 0.0
        %786 = vmatprep.subr.mxu0 0.0
        %787 = vmatpush1.msra.mxu0 0.0
        %788 = vmatprep.subr.mxu0 0.0
        %789 = vmatpush1.msra.mxu0 0.0
        %790 = vmatprep.subr.mxu0 0.0
        %791 = vmatpush1.msra.mxu0 0.0
        %792 = vmatprep.subr.mxu0 0.0
        %793 = vmatpush1.msra.mxu0 0.0
        %794 = vmatprep.subr.mxu0 0.0
        %795 = vmatpush1.msra.mxu0 0.0
        %796 = vmatprep.subr.mxu0 0.0
        %797 = vmatpush1.msra.mxu0 0.0
        %798 = vmatprep.subr.mxu0 0.0
        %799 = vmatpush1.msra.mxu0 0.0
        %800 = vmatprep.subr.mxu0 0.0
        %801 = vmatpush1.msra.mxu0 0.0
        %802 = vmatprep.subr.mxu0 0.0
        %803 = vmatpush1.msra.mxu0 0.0
        %804 = vmatprep.mubr.f32.mxu0 0.0
        %805 = vmatmul.mubr.f32.gmra.mrb[0].mxu0 %v661
        %v806 = vpop.f32.mrb[0].mxu0
        %v807 = vadd.f32 0.0, %v806
        %v808 = vpop.f32.mrb[0].mxu0
        %809 = vdwg.mxu0
        %v810 = vadd.f32 %v637, %v736
        %v811 = vadd.f32 %v638, %v738
        %v812 = vadd.f32 %v639, %v807
        %v813 = vld [vmem:[%s141] sm:$0xff]
        %v814 = vld [vmem:[%s141 + $0x8] sm:$0xff]
        %s815 = scalar_lea.vmem %s1, 32
        %v816 = vld [vmem:[%s815] sm:$0xff]
        %v819 = vcombine.high %v813, %v813
        %v820 = vcombine.high %v814, %v814
        %821 = vrot.lane.b32.xlu0 %v813, 109
        %v822 = vpop.permute.xlu0 %821
        %823 = vrot.lane.b32.xlu0 %v819, 109
        %v824 = vpop.permute.xlu0 %823
        %825 = vrot.lane.b32.xlu0 %v814, 109
        %v826 = vpop.permute.xlu0 %825
        %827 = vrot.lane.b32.xlu0 %v820, 109
        %v828 = vpop.permute.xlu0 %827
        %vm829 = vcmask 891904
        %v830 = vsel %vm829, %v822, %v824
        %v831 = vsel %vm829, %v824, %v826
        %v832 = vsel %vm829, %v826, %v828
        %v834 = vsel %vm164, %v816, 0
        %v836 = vsel %vm168, %v830, 0
        %v838 = vsel %vm168, %v831, 0
        %v840 = vsel %vm168, %v832, 0
        %842 = vmatprep.subr.mxu0 %v838
        %843 = vmatpush1.msra.mxu0 %v836
        %844 = vmatprep.subr.mxu0 0.0
        %845 = vmatpush1.msra.mxu0 0.0
        %846 = vmatprep.subr.mxu0 0.0
        %847 = vmatpush1.msra.mxu0 0.0
        %848 = vmatprep.subr.mxu0 0.0
        %849 = vmatpush1.msra.mxu0 0.0
        %850 = vmatprep.subr.mxu0 0.0
        %851 = vmatpush1.msra.mxu0 0.0
        %852 = vmatprep.subr.mxu0 0.0
        %853 = vmatpush1.msra.mxu0 0.0
        %854 = vmatprep.subr.mxu0 0.0
        %855 = vmatpush1.msra.mxu0 0.0
        %856 = vmatprep.subr.mxu0 0.0
        %857 = vmatpush1.msra.mxu0 0.0
        %858 = vmatprep.subr.mxu0 0.0
        %859 = vmatpush1.msra.mxu0 0.0
        %860 = vmatprep.subr.mxu0 0.0
        %861 = vmatpush1.msra.mxu0 0.0
        %862 = vmatprep.subr.mxu0 0.0
        %863 = vmatpush1.msra.mxu0 0.0
        %864 = vmatprep.subr.mxu0 0.0
        %865 = vmatpush1.msra.mxu0 0.0
        %866 = vmatprep.subr.mxu0 0.0
        %867 = vmatpush1.msra.mxu0 0.0
        %868 = vmatprep.subr.mxu0 0.0
        %869 = vmatpush1.msra.mxu0 0.0
        %870 = vmatprep.subr.mxu0 0.0
        %871 = vmatpush1.msra.mxu0 0.0
        %872 = vmatprep.subr.mxu0 0.0
        %873 = vmatpush1.msra.mxu0 0.0
        %874 = vmatprep.subr.mxu0 0.0
        %875 = vmatpush1.msra.mxu0 0.0
        %876 = vmatprep.subr.mxu0 0.0
        %877 = vmatpush1.msra.mxu0 0.0
        %878 = vmatprep.subr.mxu0 0.0
        %879 = vmatpush1.msra.mxu0 0.0
        %880 = vmatprep.subr.mxu0 0.0
        %881 = vmatpush1.msra.mxu0 0.0
        %882 = vmatprep.subr.mxu0 0.0
        %883 = vmatpush1.msra.mxu0 0.0
        %884 = vmatprep.subr.mxu0 0.0
        %885 = vmatpush1.msra.mxu0 0.0
        %886 = vmatprep.subr.mxu0 0.0
        %887 = vmatpush1.msra.mxu0 0.0
        %888 = vmatprep.subr.mxu0 0.0
        %889 = vmatpush1.msra.mxu0 0.0
        %890 = vmatprep.subr.mxu0 0.0
        %891 = vmatpush1.msra.mxu0 0.0
        %892 = vmatprep.subr.mxu0 0.0
        %893 = vmatpush1.msra.mxu0 0.0
        %894 = vmatprep.subr.mxu0 0.0
        %895 = vmatpush1.msra.mxu0 0.0
        %896 = vmatprep.subr.mxu0 0.0
        %897 = vmatpush1.msra.mxu0 0.0
        %898 = vmatprep.subr.mxu0 0.0
        %899 = vmatpush1.msra.mxu0 0.0
        %900 = vmatprep.subr.mxu0 0.0
        %901 = vmatpush1.msra.mxu0 0.0
        %902 = vmatprep.subr.mxu0 0.0
        %903 = vmatpush1.msra.mxu0 0.0
        %904 = vmatprep.subr.mxu0 0.0
        %905 = vmatpush1.msra.mxu0 0.0
        %906 = vmatprep.mubr.f32.mxu0 0.0
        %907 = vmatmul.mubr.f32.gmra.mrb[0].mxu0 %v834
        %v908 = vpop.f32.mrb[0].mxu0
        %v909 = vadd.f32 0.0, %v908
        %v910 = vpop.f32.mrb[0].mxu0
        %v911 = vadd.f32 0.0, %v910
        %912 = vdwg.mxu0
        %913 = vmatprep.subr.mxu0 0.0
        %914 = vmatpush1.msra.mxu0 %v840
        %915 = vmatprep.subr.mxu0 0.0
        %916 = vmatpush1.msra.mxu0 0.0
        %917 = vmatprep.subr.mxu0 0.0
        %918 = vmatpush1.msra.mxu0 0.0
        %919 = vmatprep.subr.mxu0 0.0
        %920 = vmatpush1.msra.mxu0 0.0
        %921 = vmatprep.subr.mxu0 0.0
        %922 = vmatpush1.msra.mxu0 0.0
        %923 = vmatprep.subr.mxu0 0.0
        %924 = vmatpush1.msra.mxu0 0.0
        %925 = vmatprep.subr.mxu0 0.0
        %926 = vmatpush1.msra.mxu0 0.0
        %927 = vmatprep.subr.mxu0 0.0
        %928 = vmatpush1.msra.mxu0 0.0
        %929 = vmatprep.subr.mxu0 0.0
        %930 = vmatpush1.msra.mxu0 0.0
        %931 = vmatprep.subr.mxu0 0.0
        %932 = vmatpush1.msra.mxu0 0.0
        %933 = vmatprep.subr.mxu0 0.0
        %934 = vmatpush1.msra.mxu0 0.0
        %935 = vmatprep.subr.mxu0 0.0
        %936 = vmatpush1.msra.mxu0 0.0
        %937 = vmatprep.subr.mxu0 0.0
        %938 = vmatpush1.msra.mxu0 0.0
        %939 = vmatprep.subr.mxu0 0.0
        %940 = vmatpush1.msra.mxu0 0.0
        %941 = vmatprep.subr.mxu0 0.0
        %942 = vmatpush1.msra.mxu0 0.0
        %943 = vmatprep.subr.mxu0 0.0
        %944 = vmatpush1.msra.mxu0 0.0
        %945 = vmatprep.subr.mxu0 0.0
        %946 = vmatpush1.msra.mxu0 0.0
        %947 = vmatprep.subr.mxu0 0.0
        %948 = vmatpush1.msra.mxu0 0.0
        %949 = vmatprep.subr.mxu0 0.0
        %950 = vmatpush1.msra.mxu0 0.0
        %951 = vmatprep.subr.mxu0 0.0
        %952 = vmatpush1.msra.mxu0 0.0
        %953 = vmatprep.subr.mxu0 0.0
        %954 = vmatpush1.msra.mxu0 0.0
        %955 = vmatprep.subr.mxu0 0.0
        %956 = vmatpush1.msra.mxu0 0.0
        %957 = vmatprep.subr.mxu0 0.0
        %958 = vmatpush1.msra.mxu0 0.0
        %959 = vmatprep.subr.mxu0 0.0
        %960 = vmatpush1.msra.mxu0 0.0
        %961 = vmatprep.subr.mxu0 0.0
        %962 = vmatpush1.msra.mxu0 0.0
        %963 = vmatprep.subr.mxu0 0.0
        %964 = vmatpush1.msra.mxu0 0.0
        %965 = vmatprep.subr.mxu0 0.0
        %966 = vmatpush1.msra.mxu0 0.0
        %967 = vmatprep.subr.mxu0 0.0
        %968 = vmatpush1.msra.mxu0 0.0
        %969 = vmatprep.subr.mxu0 0.0
        %970 = vmatpush1.msra.mxu0 0.0
        %971 = vmatprep.subr.mxu0 0.0
        %972 = vmatpush1.msra.mxu0 0.0
        %973 = vmatprep.subr.mxu0 0.0
        %974 = vmatpush1.msra.mxu0 0.0
        %975 = vmatprep.subr.mxu0 0.0
        %976 = vmatpush1.msra.mxu0 0.0
        %977 = vmatprep.mubr.f32.mxu0 0.0
        %978 = vmatmul.mubr.f32.gmra.mrb[0].mxu0 %v834
        %v979 = vpop.f32.mrb[0].mxu0
        %v980 = vadd.f32 0.0, %v979
        %v981 = vpop.f32.mrb[0].mxu0
        %982 = vdwg.mxu0
        %v983 = vadd.f32 %v810, %v909
        %v984 = vadd.f32 %v811, %v911
        %v985 = vadd.f32 %v812, %v980
        %v986 = vld [vmem:[%s141] sm:$0xff]
        %v987 = vld [vmem:[%s141 + $0x8] sm:$0xff]
        %s988 = scalar_lea.vmem %s1, 40
        %v989 = vld [vmem:[%s988] sm:$0xff]
        %v992 = vcombine.high %v986, %v986
        %v993 = vcombine.high %v987, %v987
        %994 = vrot.lane.b32.xlu0 %v986, 108
        %v995 = vpop.permute.xlu0 %994
        %996 = vrot.lane.b32.xlu0 %v992, 108
        %v997 = vpop.permute.xlu0 %996
        %998 = vrot.lane.b32.xlu0 %v987, 108
        %v999 = vpop.permute.xlu0 %998
        %1000 = vrot.lane.b32.xlu0 %v993, 108
        %v1001 = vpop.permute.xlu0 %1000
        %vm1002 = vcmask 883712
        %v1003 = vsel %vm1002, %v995, %v997
        %v1004 = vsel %vm1002, %v997, %v999
        %v1005 = vsel %vm1002, %v999, %v1001
        %v1007 = vsel %vm164, %v989, 0
        %v1009 = vsel %vm168, %v1003, 0
        %v1011 = vsel %vm168, %v1004, 0
        %v1013 = vsel %vm168, %v1005, 0
        %1015 = vmatprep.subr.mxu0 %v1011
        %1016 = vmatpush1.msra.mxu0 %v1009
        %1017 = vmatprep.subr.mxu0 0.0
        %1018 = vmatpush1.msra.mxu0 0.0
        %1019 = vmatprep.subr.mxu0 0.0
        %1020 = vmatpush1.msra.mxu0 0.0
        %1021 = vmatprep.subr.mxu0 0.0
        %1022 = vmatpush1.msra.mxu0 0.0
        %1023 = vmatprep.subr.mxu0 0.0
        %1024 = vmatpush1.msra.mxu0 0.0
        %1025 = vmatprep.subr.mxu0 0.0
        %1026 = vmatpush1.msra.mxu0 0.0
        %1027 = vmatprep.subr.mxu0 0.0
        %1028 = vmatpush1.msra.mxu0 0.0
        %1029 = vmatprep.subr.mxu0 0.0
        %1030 = vmatpush1.msra.mxu0 0.0
        %1031 = vmatprep.subr.mxu0 0.0
        %1032 = vmatpush1.msra.mxu0 0.0
        %1033 = vmatprep.subr.mxu0 0.0
        %1034 = vmatpush1.msra.mxu0 0.0
        %1035 = vmatprep.subr.mxu0 0.0
        %1036 = vmatpush1.msra.mxu0 0.0
        %1037 = vmatprep.subr.mxu0 0.0
        %1038 = vmatpush1.msra.mxu0 0.0
        %1039 = vmatprep.subr.mxu0 0.0
        %1040 = vmatpush1.msra.mxu0 0.0
        %1041 = vmatprep.subr.mxu0 0.0
        %1042 = vmatpush1.msra.mxu0 0.0
        %1043 = vmatprep.subr.mxu0 0.0
        %1044 = vmatpush1.msra.mxu0 0.0
        %1045 = vmatprep.subr.mxu0 0.0
        %1046 = vmatpush1.msra.mxu0 0.0
        %1047 = vmatprep.subr.mxu0 0.0
        %1048 = vmatpush1.msra.mxu0 0.0
        %1049 = vmatprep.subr.mxu0 0.0
        %1050 = vmatpush1.msra.mxu0 0.0
        %1051 = vmatprep.subr.mxu0 0.0
        %1052 = vmatpush1.msra.mxu0 0.0
        %1053 = vmatprep.subr.mxu0 0.0
        %1054 = vmatpush1.msra.mxu0 0.0
        %1055 = vmatprep.subr.mxu0 0.0
        %1056 = vmatpush1.msra.mxu0 0.0
        %1057 = vmatprep.subr.mxu0 0.0
        %1058 = vmatpush1.msra.mxu0 0.0
        %1059 = vmatprep.subr.mxu0 0.0
        %1060 = vmatpush1.msra.mxu0 0.0
        %1061 = vmatprep.subr.mxu0 0.0
        %1062 = vmatpush1.msra.mxu0 0.0
        %1063 = vmatprep.subr.mxu0 0.0
        %1064 = vmatpush1.msra.mxu0 0.0
        %1065 = vmatprep.subr.mxu0 0.0
        %1066 = vmatpush1.msra.mxu0 0.0
        %1067 = vmatprep.subr.mxu0 0.0
        %1068 = vmatpush1.msra.mxu0 0.0
        %1069 = vmatprep.subr.mxu0 0.0
        %1070 = vmatpush1.msra.mxu0 0.0
        %1071 = vmatprep.subr.mxu0 0.0
        %1072 = vmatpush1.msra.mxu0 0.0
        %1073 = vmatprep.subr.mxu0 0.0
        %1074 = vmatpush1.msra.mxu0 0.0
        %1075 = vmatprep.subr.mxu0 0.0
        %1076 = vmatpush1.msra.mxu0 0.0
        %1077 = vmatprep.subr.mxu0 0.0
        %1078 = vmatpush1.msra.mxu0 0.0
        %1079 = vmatprep.mubr.f32.mxu0 0.0
        %1080 = vmatmul.mubr.f32.gmra.mrb[0].mxu0 %v1007
        %v1081 = vpop.f32.mrb[0].mxu0
        %v1082 = vadd.f32 0.0, %v1081
        %v1083 = vpop.f32.mrb[0].mxu0
        %v1084 = vadd.f32 0.0, %v1083
        %1085 = vdwg.mxu0
        %1086 = vmatprep.subr.mxu0 0.0
        %1087 = vmatpush1.msra.mxu0 %v1013
        %1088 = vmatprep.subr.mxu0 0.0
        %1089 = vmatpush1.msra.mxu0 0.0
        %1090 = vmatprep.subr.mxu0 0.0
        %1091 = vmatpush1.msra.mxu0 0.0
        %1092 = vmatprep.subr.mxu0 0.0
        %1093 = vmatpush1.msra.mxu0 0.0
        %1094 = vmatprep.subr.mxu0 0.0
        %1095 = vmatpush1.msra.mxu0 0.0
        %1096 = vmatprep.subr.mxu0 0.0
        %1097 = vmatpush1.msra.mxu0 0.0
        %1098 = vmatprep.subr.mxu0 0.0
        %1099 = vmatpush1.msra.mxu0 0.0
        %1100 = vmatprep.subr.mxu0 0.0
        %1101 = vmatpush1.msra.mxu0 0.0
        %1102 = vmatprep.subr.mxu0 0.0
        %1103 = vmatpush1.msra.mxu0 0.0
        %1104 = vmatprep.subr.mxu0 0.0
        %1105 = vmatpush1.msra.mxu0 0.0
        %1106 = vmatprep.subr.mxu0 0.0
        %1107 = vmatpush1.msra.mxu0 0.0
        %1108 = vmatprep.subr.mxu0 0.0
        %1109 = vmatpush1.msra.mxu0 0.0
        %1110 = vmatprep.subr.mxu0 0.0
        %1111 = vmatpush1.msra.mxu0 0.0
        %1112 = vmatprep.subr.mxu0 0.0
        %1113 = vmatpush1.msra.mxu0 0.0
        %1114 = vmatprep.subr.mxu0 0.0
        %1115 = vmatpush1.msra.mxu0 0.0
        %1116 = vmatprep.subr.mxu0 0.0
        %1117 = vmatpush1.msra.mxu0 0.0
        %1118 = vmatprep.subr.mxu0 0.0
        %1119 = vmatpush1.msra.mxu0 0.0
        %1120 = vmatprep.subr.mxu0 0.0
        %1121 = vmatpush1.msra.mxu0 0.0
        %1122 = vmatprep.subr.mxu0 0.0
        %1123 = vmatpush1.msra.mxu0 0.0
        %1124 = vmatprep.subr.mxu0 0.0
        %1125 = vmatpush1.msra.mxu0 0.0
        %1126 = vmatprep.subr.mxu0 0.0
        %1127 = vmatpush1.msra.mxu0 0.0
        %1128 = vmatprep.subr.mxu0 0.0
        %1129 = vmatpush1.msra.mxu0 0.0
        %1130 = vmatprep.subr.mxu0 0.0
        %1131 = vmatpush1.msra.mxu0 0.0
        %1132 = vmatprep.subr.mxu0 0.0
        %1133 = vmatpush1.msra.mxu0 0.0
        %1134 = vmatprep.subr.mxu0 0.0
        %1135 = vmatpush1.msra.mxu0 0.0
        %1136 = vmatprep.subr.mxu0 0.0
        %1137 = vmatpush1.msra.mxu0 0.0
        %1138 = vmatprep.subr.mxu0 0.0
        %1139 = vmatpush1.msra.mxu0 0.0
        %1140 = vmatprep.subr.mxu0 0.0
        %1141 = vmatpush1.msra.mxu0 0.0
        %1142 = vmatprep.subr.mxu0 0.0
        %1143 = vmatpush1.msra.mxu0 0.0
        %1144 = vmatprep.subr.mxu0 0.0
        %1145 = vmatpush1.msra.mxu0 0.0
        %1146 = vmatprep.subr.mxu0 0.0
        %1147 = vmatpush1.msra.mxu0 0.0
        %1148 = vmatprep.subr.mxu0 0.0
        %1149 = vmatpush1.msra.mxu0 0.0
        %1150 = vmatprep.mubr.f32.mxu0 0.0
        %1151 = vmatmul.mubr.f32.gmra.mrb[0].mxu0 %v1007
        %v1152 = vpop.f32.mrb[0].mxu0
        %v1153 = vadd.f32 0.0, %v1152
        %v1154 = vpop.f32.mrb[0].mxu0
        %1155 = vdwg.mxu0
        %v1156 = vadd.f32 %v983, %v1082
        %v1157 = vadd.f32 %v984, %v1084
        %v1158 = vadd.f32 %v985, %v1153
        %v1159 = vld [vmem:[%s141] sm:$0xff]
        %v1160 = vld [vmem:[%s141 + $0x8] sm:$0xff]
        %s1161 = scalar_lea.vmem %s1, 48
        %v1162 = vld [vmem:[%s1161] sm:$0xff]
        %v1165 = vcombine.high %v1159, %v1159
        %v1166 = vcombine.high %v1160, %v1160
        %1167 = vrot.lane.b32.xlu0 %v1159, 92
        %v1168 = vpop.permute.xlu0 %1167
        %1169 = vrot.lane.b32.xlu0 %v1165, 92
        %v1170 = vpop.permute.xlu0 %1169
        %1171 = vrot.lane.b32.xlu0 %v1160, 92
        %v1172 = vpop.permute.xlu0 %1171
        %1173 = vrot.lane.b32.xlu0 %v1166, 92
        %v1174 = vpop.permute.xlu0 %1173
        %vm1175 = vcmask 752640
        %v1176 = vsel %vm1175, %v1168, %v1170
        %v1177 = vsel %vm1175, %v1170, %v1172
        %v1178 = vsel %vm1175, %v1172, %v1174
        %v1180 = vsel %vm164, %v1162, 0
        %v1182 = vsel %vm168, %v1176, 0
        %v1184 = vsel %vm168, %v1177, 0
        %v1186 = vsel %vm168, %v1178, 0
        %1188 = vmatprep.subr.mxu0 %v1184
        %1189 = vmatpush1.msra.mxu0 %v1182
        %1190 = vmatprep.subr.mxu0 0.0
        %1191 = vmatpush1.msra.mxu0 0.0
        %1192 = vmatprep.subr.mxu0 0.0
        %1193 = vmatpush1.msra.mxu0 0.0
        %1194 = vmatprep.subr.mxu0 0.0
        %1195 = vmatpush1.msra.mxu0 0.0
        %1196 = vmatprep.subr.mxu0 0.0
        %1197 = vmatpush1.msra.mxu0 0.0
        %1198 = vmatprep.subr.mxu0 0.0
        %1199 = vmatpush1.msra.mxu0 0.0
        %1200 = vmatprep.subr.mxu0 0.0
        %1201 = vmatpush1.msra.mxu0 0.0
        %1202 = vmatprep.subr.mxu0 0.0
        %1203 = vmatpush1.msra.mxu0 0.0
        %1204 = vmatprep.subr.mxu0 0.0
        %1205 = vmatpush1.msra.mxu0 0.0
        %1206 = vmatprep.subr.mxu0 0.0
        %1207 = vmatpush1.msra.mxu0 0.0
        %1208 = vmatprep.subr.mxu0 0.0
        %1209 = vmatpush1.msra.mxu0 0.0
        %1210 = vmatprep.subr.mxu0 0.0
        %1211 = vmatpush1.msra.mxu0 0.0
        %1212 = vmatprep.subr.mxu0 0.0
        %1213 = vmatpush1.msra.mxu0 0.0
        %1214 = vmatprep.subr.mxu0 0.0
        %1215 = vmatpush1.msra.mxu0 0.0
        %1216 = vmatprep.subr.mxu0 0.0
        %1217 = vmatpush1.msra.mxu0 0.0
        %1218 = vmatprep.subr.mxu0 0.0
        %1219 = vmatpush1.msra.mxu0 0.0
        %1220 = vmatprep.subr.mxu0 0.0
        %1221 = vmatpush1.msra.mxu0 0.0
        %1222 = vmatprep.subr.mxu0 0.0
        %1223 = vmatpush1.msra.mxu0 0.0
        %1224 = vmatprep.subr.mxu0 0.0
        %1225 = vmatpush1.msra.mxu0 0.0
        %1226 = vmatprep.subr.mxu0 0.0
        %1227 = vmatpush1.msra.mxu0 0.0
        %1228 = vmatprep.subr.mxu0 0.0
        %1229 = vmatpush1.msra.mxu0 0.0
        %1230 = vmatprep.subr.mxu0 0.0
        %1231 = vmatpush1.msra.mxu0 0.0
        %1232 = vmatprep.subr.mxu0 0.0
        %1233 = vmatpush1.msra.mxu0 0.0
        %1234 = vmatprep.subr.mxu0 0.0
        %1235 = vmatpush1.msra.mxu0 0.0
        %1236 = vmatprep.subr.mxu0 0.0
        %1237 = vmatpush1.msra.mxu0 0.0
        %1238 = vmatprep.subr.mxu0 0.0
        %1239 = vmatpush1.msra.mxu0 0.0
        %1240 = vmatprep.subr.mxu0 0.0
        %1241 = vmatpush1.msra.mxu0 0.0
        %1242 = vmatprep.subr.mxu0 0.0
        %1243 = vmatpush1.msra.mxu0 0.0
        %1244 = vmatprep.subr.mxu0 0.0
        %1245 = vmatpush1.msra.mxu0 0.0
        %1246 = vmatprep.subr.mxu0 0.0
        %1247 = vmatpush1.msra.mxu0 0.0
        %1248 = vmatprep.subr.mxu0 0.0
        %1249 = vmatpush1.msra.mxu0 0.0
        %1250 = vmatprep.subr.mxu0 0.0
        %1251 = vmatpush1.msra.mxu0 0.0
        %1252 = vmatprep.mubr.f32.mxu0 0.0
        %1253 = vmatmul.mubr.f32.gmra.mrb[0].mxu0 %v1180
        %v1254 = vpop.f32.mrb[0].mxu0
        %v1255 = vadd.f32 0.0, %v1254
        %v1256 = vpop.f32.mrb[0].mxu0
        %v1257 = vadd.f32 0.0, %v1256
        %1258 = vdwg.mxu0
        %1259 = vmatprep.subr.mxu0 0.0
        %1260 = vmatpush1.msra.mxu0 %v1186
        %1261 = vmatprep.subr.mxu0 0.0
        %1262 = vmatpush1.msra.mxu0 0.0
        %1263 = vmatprep.subr.mxu0 0.0
        %1264 = vmatpush1.msra.mxu0 0.0
        %1265 = vmatprep.subr.mxu0 0.0
        %1266 = vmatpush1.msra.mxu0 0.0
        %1267 = vmatprep.subr.mxu0 0.0
        %1268 = vmatpush1.msra.mxu0 0.0
        %1269 = vmatprep.subr.mxu0 0.0
        %1270 = vmatpush1.msra.mxu0 0.0
        %1271 = vmatprep.subr.mxu0 0.0
        %1272 = vmatpush1.msra.mxu0 0.0
        %1273 = vmatprep.subr.mxu0 0.0
        %1274 = vmatpush1.msra.mxu0 0.0
        %1275 = vmatprep.subr.mxu0 0.0
        %1276 = vmatpush1.msra.mxu0 0.0
        %1277 = vmatprep.subr.mxu0 0.0
        %1278 = vmatpush1.msra.mxu0 0.0
        %1279 = vmatprep.subr.mxu0 0.0
        %1280 = vmatpush1.msra.mxu0 0.0
        %1281 = vmatprep.subr.mxu0 0.0
        %1282 = vmatpush1.msra.mxu0 0.0
        %1283 = vmatprep.subr.mxu0 0.0
        %1284 = vmatpush1.msra.mxu0 0.0
        %1285 = vmatprep.subr.mxu0 0.0
        %1286 = vmatpush1.msra.mxu0 0.0
        %1287 = vmatprep.subr.mxu0 0.0
        %1288 = vmatpush1.msra.mxu0 0.0
        %1289 = vmatprep.subr.mxu0 0.0
        %1290 = vmatpush1.msra.mxu0 0.0
        %1291 = vmatprep.subr.mxu0 0.0
        %1292 = vmatpush1.msra.mxu0 0.0
        %1293 = vmatprep.subr.mxu0 0.0
        %1294 = vmatpush1.msra.mxu0 0.0
        %1295 = vmatprep.subr.mxu0 0.0
        %1296 = vmatpush1.msra.mxu0 0.0
        %1297 = vmatprep.subr.mxu0 0.0
        %1298 = vmatpush1.msra.mxu0 0.0
        %1299 = vmatprep.subr.mxu0 0.0
        %1300 = vmatpush1.msra.mxu0 0.0
        %1301 = vmatprep.subr.mxu0 0.0
        %1302 = vmatpush1.msra.mxu0 0.0
        %1303 = vmatprep.subr.mxu0 0.0
        %1304 = vmatpush1.msra.mxu0 0.0
        %1305 = vmatprep.subr.mxu0 0.0
        %1306 = vmatpush1.msra.mxu0 0.0
        %1307 = vmatprep.subr.mxu0 0.0
        %1308 = vmatpush1.msra.mxu0 0.0
        %1309 = vmatprep.subr.mxu0 0.0
        %1310 = vmatpush1.msra.mxu0 0.0
        %1311 = vmatprep.subr.mxu0 0.0
        %1312 = vmatpush1.msra.mxu0 0.0
        %1313 = vmatprep.subr.mxu0 0.0
        %1314 = vmatpush1.msra.mxu0 0.0
        %1315 = vmatprep.subr.mxu0 0.0
        %1316 = vmatpush1.msra.mxu0 0.0
        %1317 = vmatprep.subr.mxu0 0.0
        %1318 = vmatpush1.msra.mxu0 0.0
        %1319 = vmatprep.subr.mxu0 0.0
        %1320 = vmatpush1.msra.mxu0 0.0
        %1321 = vmatprep.subr.mxu0 0.0
        %1322 = vmatpush1.msra.mxu0 0.0
        %1323 = vmatprep.mubr.f32.mxu0 0.0
        %1324 = vmatmul.mubr.f32.gmra.mrb[0].mxu0 %v1180
        %v1325 = vpop.f32.mrb[0].mxu0
        %v1326 = vadd.f32 0.0, %v1325
        %v1327 = vpop.f32.mrb[0].mxu0
        %1328 = vdwg.mxu0
        %v1329 = vadd.f32 %v1156, %v1255
        %v1330 = vadd.f32 %v1157, %v1257
        %v1331 = vadd.f32 %v1158, %v1326
        %v1332 = vld [vmem:[%s141] sm:$0xff]
        %v1333 = vld [vmem:[%s141 + $0x8] sm:$0xff]
        %s1334 = scalar_lea.vmem %s1, 56
        %v1335 = vld [vmem:[%s1334] sm:$0xff]
        %v1338 = vcombine.high %v1332, %v1332
        %v1339 = vcombine.high %v1333, %v1333
        %1340 = vrot.lane.b32.xlu0 %v1332, 91
        %v1341 = vpop.permute.xlu0 %1340
        %1342 = vrot.lane.b32.xlu0 %v1338, 91
        %v1343 = vpop.permute.xlu0 %1342
        %1344 = vrot.lane.b32.xlu0 %v1333, 91
        %v1345 = vpop.permute.xlu0 %1344
        %1346 = vrot.lane.b32.xlu0 %v1339, 91
        %v1347 = vpop.permute.xlu0 %1346
        %vm1348 = vcmask 744448
        %v1349 = vsel %vm1348, %v1341, %v1343
        %v1350 = vsel %vm1348, %v1343, %v1345
        %v1351 = vsel %vm1348, %v1345, %v1347
        %v1353 = vsel %vm164, %v1335, 0
        %v1355 = vsel %vm168, %v1349, 0
        %v1357 = vsel %vm168, %v1350, 0
        %v1359 = vsel %vm168, %v1351, 0
        %1361 = vmatprep.subr.mxu0 %v1357
        %1362 = vmatpush1.msra.mxu0 %v1355
        %1363 = vmatprep.subr.mxu0 0.0
        %1364 = vmatpush1.msra.mxu0 0.0
        %1365 = vmatprep.subr.mxu0 0.0
        %1366 = vmatpush1.msra.mxu0 0.0
        %1367 = vmatprep.subr.mxu0 0.0
        %1368 = vmatpush1.msra.mxu0 0.0
        %1369 = vmatprep.subr.mxu0 0.0
        %1370 = vmatpush1.msra.mxu0 0.0
        %1371 = vmatprep.subr.mxu0 0.0
        %1372 = vmatpush1.msra.mxu0 0.0
        %1373 = vmatprep.subr.mxu0 0.0
        %1374 = vmatpush1.msra.mxu0 0.0
        %1375 = vmatprep.subr.mxu0 0.0
        %1376 = vmatpush1.msra.mxu0 0.0
        %1377 = vmatprep.subr.mxu0 0.0
        %1378 = vmatpush1.msra.mxu0 0.0
        %1379 = vmatprep.subr.mxu0 0.0
        %1380 = vmatpush1.msra.mxu0 0.0
        %1381 = vmatprep.subr.mxu0 0.0
        %1382 = vmatpush1.msra.mxu0 0.0
        %1383 = vmatprep.subr.mxu0 0.0
        %1384 = vmatpush1.msra.mxu0 0.0
        %1385 = vmatprep.subr.mxu0 0.0
        %1386 = vmatpush1.msra.mxu0 0.0
        %1387 = vmatprep.subr.mxu0 0.0
        %1388 = vmatpush1.msra.mxu0 0.0
        %1389 = vmatprep.subr.mxu0 0.0
        %1390 = vmatpush1.msra.mxu0 0.0
        %1391 = vmatprep.subr.mxu0 0.0
        %1392 = vmatpush1.msra.mxu0 0.0
        %1393 = vmatprep.subr.mxu0 0.0
        %1394 = vmatpush1.msra.mxu0 0.0
        %1395 = vmatprep.subr.mxu0 0.0
        %1396 = vmatpush1.msra.mxu0 0.0
        %1397 = vmatprep.subr.mxu0 0.0
        %1398 = vmatpush1.msra.mxu0 0.0
        %1399 = vmatprep.subr.mxu0 0.0
        %1400 = vmatpush1.msra.mxu0 0.0
        %1401 = vmatprep.subr.mxu0 0.0
        %1402 = vmatpush1.msra.mxu0 0.0
        %1403 = vmatprep.subr.mxu0 0.0
        %1404 = vmatpush1.msra.mxu0 0.0
        %1405 = vmatprep.subr.mxu0 0.0
        %1406 = vmatpush1.msra.mxu0 0.0
        %1407 = vmatprep.subr.mxu0 0.0
        %1408 = vmatpush1.msra.mxu0 0.0
        %1409 = vmatprep.subr.mxu0 0.0
        %1410 = vmatpush1.msra.mxu0 0.0
        %1411 = vmatprep.subr.mxu0 0.0
        %1412 = vmatpush1.msra.mxu0 0.0
        %1413 = vmatprep.subr.mxu0 0.0
        %1414 = vmatpush1.msra.mxu0 0.0
        %1415 = vmatprep.subr.mxu0 0.0
        %1416 = vmatpush1.msra.mxu0 0.0
        %1417 = vmatprep.subr.mxu0 0.0
        %1418 = vmatpush1.msra.mxu0 0.0
        %1419 = vmatprep.subr.mxu0 0.0
        %1420 = vmatpush1.msra.mxu0 0.0
        %1421 = vmatprep.subr.mxu0 0.0
        %1422 = vmatpush1.msra.mxu0 0.0
        %1423 = vmatprep.subr.mxu0 0.0
        %1424 = vmatpush1.msra.mxu0 0.0
        %1425 = vmatprep.mubr.f32.mxu0 0.0
        %1426 = vmatmul.mubr.f32.gmra.mrb[0].mxu0 %v1353
        %v1427 = vpop.f32.mrb[0].mxu0
        %v1428 = vadd.f32 0.0, %v1427
        %v1429 = vpop.f32.mrb[0].mxu0
        %v1430 = vadd.f32 0.0, %v1429
        %1431 = vdwg.mxu0
        %1432 = vmatprep.subr.mxu0 0.0
        %1433 = vmatpush1.msra.mxu0 %v1359
        %1434 = vmatprep.subr.mxu0 0.0
        %1435 = vmatpush1.msra.mxu0 0.0
        %1436 = vmatprep.subr.mxu0 0.0
        %1437 = vmatpush1.msra.mxu0 0.0
        %1438 = vmatprep.subr.mxu0 0.0
        %1439 = vmatpush1.msra.mxu0 0.0
        %1440 = vmatprep.subr.mxu0 0.0
        %1441 = vmatpush1.msra.mxu0 0.0
        %1442 = vmatprep.subr.mxu0 0.0
        %1443 = vmatpush1.msra.mxu0 0.0
        %1444 = vmatprep.subr.mxu0 0.0
        %1445 = vmatpush1.msra.mxu0 0.0
        %1446 = vmatprep.subr.mxu0 0.0
        %1447 = vmatpush1.msra.mxu0 0.0
        %1448 = vmatprep.subr.mxu0 0.0
        %1449 = vmatpush1.msra.mxu0 0.0
        %1450 = vmatprep.subr.mxu0 0.0
        %1451 = vmatpush1.msra.mxu0 0.0
        %1452 = vmatprep.subr.mxu0 0.0
        %1453 = vmatpush1.msra.mxu0 0.0
        %1454 = vmatprep.subr.mxu0 0.0
        %1455 = vmatpush1.msra.mxu0 0.0
        %1456 = vmatprep.subr.mxu0 0.0
        %1457 = vmatpush1.msra.mxu0 0.0
        %1458 = vmatprep.subr.mxu0 0.0
        %1459 = vmatpush1.msra.mxu0 0.0
        %1460 = vmatprep.subr.mxu0 0.0
        %1461 = vmatpush1.msra.mxu0 0.0
        %1462 = vmatprep.subr.mxu0 0.0
        %1463 = vmatpush1.msra.mxu0 0.0
        %1464 = vmatprep.subr.mxu0 0.0
        %1465 = vmatpush1.msra.mxu0 0.0
        %1466 = vmatprep.subr.mxu0 0.0
        %1467 = vmatpush1.msra.mxu0 0.0
        %1468 = vmatprep.subr.mxu0 0.0
        %1469 = vmatpush1.msra.mxu0 0.0
        %1470 = vmatprep.subr.mxu0 0.0
        %1471 = vmatpush1.msra.mxu0 0.0
        %1472 = vmatprep.subr.mxu0 0.0
        %1473 = vmatpush1.msra.mxu0 0.0
        %1474 = vmatprep.subr.mxu0 0.0
        %1475 = vmatpush1.msra.mxu0 0.0
        %1476 = vmatprep.subr.mxu0 0.0
        %1477 = vmatpush1.msra.mxu0 0.0
        %1478 = vmatprep.subr.mxu0 0.0
        %1479 = vmatpush1.msra.mxu0 0.0
        %1480 = vmatprep.subr.mxu0 0.0
        %1481 = vmatpush1.msra.mxu0 0.0
        %1482 = vmatprep.subr.mxu0 0.0
        %1483 = vmatpush1.msra.mxu0 0.0
        %1484 = vmatprep.subr.mxu0 0.0
        %1485 = vmatpush1.msra.mxu0 0.0
        %1486 = vmatprep.subr.mxu0 0.0
        %1487 = vmatpush1.msra.mxu0 0.0
        %1488 = vmatprep.subr.mxu0 0.0
        %1489 = vmatpush1.msra.mxu0 0.0
        %1490 = vmatprep.subr.mxu0 0.0
        %1491 = vmatpush1.msra.mxu0 0.0
        %1492 = vmatprep.subr.mxu0 0.0
        %1493 = vmatpush1.msra.mxu0 0.0
        %1494 = vmatprep.subr.mxu0 0.0
        %1495 = vmatpush1.msra.mxu0 0.0
        %1496 = vmatprep.mubr.f32.mxu0 0.0
        %1497 = vmatmul.mubr.f32.gmra.mrb[0].mxu0 %v1353
        %v1498 = vpop.f32.mrb[0].mxu0
        %v1499 = vadd.f32 0.0, %v1498
        %v1500 = vpop.f32.mrb[0].mxu0
        %1501 = vdwg.mxu0
        %v1502 = vadd.f32 %v1329, %v1428
        %v1503 = vadd.f32 %v1330, %v1430
        %v1504 = vadd.f32 %v1331, %v1499
        %v1505 = vld [vmem:[%s141] sm:$0xff]
        %v1506 = vld [vmem:[%s141 + $0x8] sm:$0xff]
        %s1507 = scalar_lea.vmem %s1, 64
        %v1508 = vld [vmem:[%s1507] sm:$0xff]
        %v1511 = vcombine.high %v1505, %v1505
        %v1512 = vcombine.high %v1506, %v1506
        %1513 = vrot.lane.b32.xlu0 %v1505, 90
        %v1514 = vpop.permute.xlu0 %1513
        %1515 = vrot.lane.b32.xlu0 %v1511, 90
        %v1516 = vpop.permute.xlu0 %1515
        %1517 = vrot.lane.b32.xlu0 %v1506, 90
        %v1518 = vpop.permute.xlu0 %1517
        %1519 = vrot.lane.b32.xlu0 %v1512, 90
        %v1520 = vpop.permute.xlu0 %1519
        %vm1521 = vcmask 736256
        %v1522 = vsel %vm1521, %v1514, %v1516
        %v1523 = vsel %vm1521, %v1516, %v1518
        %v1524 = vsel %vm1521, %v1518, %v1520
        %v1526 = vsel %vm164, %v1508, 0
        %v1528 = vsel %vm168, %v1522, 0
        %v1530 = vsel %vm168, %v1523, 0
        %v1532 = vsel %vm168, %v1524, 0
        %1534 = vmatprep.subr.mxu0 %v1530
        %1535 = vmatpush1.msra.mxu0 %v1528
        %1536 = vmatprep.subr.mxu0 0.0
        %1537 = vmatpush1.msra.mxu0 0.0
        %1538 = vmatprep.subr.mxu0 0.0
        %1539 = vmatpush1.msra.mxu0 0.0
        %1540 = vmatprep.subr.mxu0 0.0
        %1541 = vmatpush1.msra.mxu0 0.0
        %1542 = vmatprep.subr.mxu0 0.0
        %1543 = vmatpush1.msra.mxu0 0.0
        %1544 = vmatprep.subr.mxu0 0.0
        %1545 = vmatpush1.msra.mxu0 0.0
        %1546 = vmatprep.subr.mxu0 0.0
        %1547 = vmatpush1.msra.mxu0 0.0
        %1548 = vmatprep.subr.mxu0 0.0
        %1549 = vmatpush1.msra.mxu0 0.0
        %1550 = vmatprep.subr.mxu0 0.0
        %1551 = vmatpush1.msra.mxu0 0.0
        %1552 = vmatprep.subr.mxu0 0.0
        %1553 = vmatpush1.msra.mxu0 0.0
        %1554 = vmatprep.subr.mxu0 0.0
        %1555 = vmatpush1.msra.mxu0 0.0
        %1556 = vmatprep.subr.mxu0 0.0
        %1557 = vmatpush1.msra.mxu0 0.0
        %1558 = vmatprep.subr.mxu0 0.0
        %1559 = vmatpush1.msra.mxu0 0.0
        %1560 = vmatprep.subr.mxu0 0.0
        %1561 = vmatpush1.msra.mxu0 0.0
        %1562 = vmatprep.subr.mxu0 0.0
        %1563 = vmatpush1.msra.mxu0 0.0
        %1564 = vmatprep.subr.mxu0 0.0
        %1565 = vmatpush1.msra.mxu0 0.0
        %1566 = vmatprep.subr.mxu0 0.0
        %1567 = vmatpush1.msra.mxu0 0.0
        %1568 = vmatprep.subr.mxu0 0.0
        %1569 = vmatpush1.msra.mxu0 0.0
        %1570 = vmatprep.subr.mxu0 0.0
        %1571 = vmatpush1.msra.mxu0 0.0
        %1572 = vmatprep.subr.mxu0 0.0
        %1573 = vmatpush1.msra.mxu0 0.0
        %1574 = vmatprep.subr.mxu0 0.0
        %1575 = vmatpush1.msra.mxu0 0.0
        %1576 = vmatprep.subr.mxu0 0.0
        %1577 = vmatpush1.msra.mxu0 0.0
        %1578 = vmatprep.subr.mxu0 0.0
        %1579 = vmatpush1.msra.mxu0 0.0
        %1580 = vmatprep.subr.mxu0 0.0
        %1581 = vmatpush1.msra.mxu0 0.0
        %1582 = vmatprep.subr.mxu0 0.0
        %1583 = vmatpush1.msra.mxu0 0.0
        %1584 = vmatprep.subr.mxu0 0.0
        %1585 = vmatpush1.msra.mxu0 0.0
        %1586 = vmatprep.subr.mxu0 0.0
        %1587 = vmatpush1.msra.mxu0 0.0
        %1588 = vmatprep.subr.mxu0 0.0
        %1589 = vmatpush1.msra.mxu0 0.0
        %1590 = vmatprep.subr.mxu0 0.0
        %1591 = vmatpush1.msra.mxu0 0.0
        %1592 = vmatprep.subr.mxu0 0.0
        %1593 = vmatpush1.msra.mxu0 0.0
        %1594 = vmatprep.subr.mxu0 0.0
        %1595 = vmatpush1.msra.mxu0 0.0
        %1596 = vmatprep.subr.mxu0 0.0
        %1597 = vmatpush1.msra.mxu0 0.0
        %1598 = vmatprep.mubr.f32.mxu0 0.0
        %1599 = vmatmul.mubr.f32.gmra.mrb[0].mxu0 %v1526
        %v1600 = vpop.f32.mrb[0].mxu0
        %v1601 = vadd.f32 0.0, %v1600
        %v1602 = vpop.f32.mrb[0].mxu0
        %v1603 = vadd.f32 0.0, %v1602
        %1604 = vdwg.mxu0
        %1605 = vmatprep.subr.mxu0 0.0
        %1606 = vmatpush1.msra.mxu0 %v1532
        %1607 = vmatprep.subr.mxu0 0.0
        %1608 = vmatpush1.msra.mxu0 0.0
        %1609 = vmatprep.subr.mxu0 0.0
        %1610 = vmatpush1.msra.mxu0 0.0
        %1611 = vmatprep.subr.mxu0 0.0
        %1612 = vmatpush1.msra.mxu0 0.0
        %1613 = vmatprep.subr.mxu0 0.0
        %1614 = vmatpush1.msra.mxu0 0.0
        %1615 = vmatprep.subr.mxu0 0.0
        %1616 = vmatpush1.msra.mxu0 0.0
        %1617 = vmatprep.subr.mxu0 0.0
        %1618 = vmatpush1.msra.mxu0 0.0
        %1619 = vmatprep.subr.mxu0 0.0
        %1620 = vmatpush1.msra.mxu0 0.0
        %1621 = vmatprep.subr.mxu0 0.0
        %1622 = vmatpush1.msra.mxu0 0.0
        %1623 = vmatprep.subr.mxu0 0.0
        %1624 = vmatpush1.msra.mxu0 0.0
        %1625 = vmatprep.subr.mxu0 0.0
        %1626 = vmatpush1.msra.mxu0 0.0
        %1627 = vmatprep.subr.mxu0 0.0
        %1628 = vmatpush1.msra.mxu0 0.0
        %1629 = vmatprep.subr.mxu0 0.0
        %1630 = vmatpush1.msra.mxu0 0.0
        %1631 = vmatprep.subr.mxu0 0.0
        %1632 = vmatpush1.msra.mxu0 0.0
        %1633 = vmatprep.subr.mxu0 0.0
        %1634 = vmatpush1.msra.mxu0 0.0
        %1635 = vmatprep.subr.mxu0 0.0
        %1636 = vmatpush1.msra.mxu0 0.0
        %1637 = vmatprep.subr.mxu0 0.0
        %1638 = vmatpush1.msra.mxu0 0.0
        %1639 = vmatprep.subr.mxu0 0.0
        %1640 = vmatpush1.msra.mxu0 0.0
        %1641 = vmatprep.subr.mxu0 0.0
        %1642 = vmatpush1.msra.mxu0 0.0
        %1643 = vmatprep.subr.mxu0 0.0
        %1644 = vmatpush1.msra.mxu0 0.0
        %1645 = vmatprep.subr.mxu0 0.0
        %1646 = vmatpush1.msra.mxu0 0.0
        %1647 = vmatprep.subr.mxu0 0.0
        %1648 = vmatpush1.msra.mxu0 0.0
        %1649 = vmatprep.subr.mxu0 0.0
        %1650 = vmatpush1.msra.mxu0 0.0
        %1651 = vmatprep.subr.mxu0 0.0
        %1652 = vmatpush1.msra.mxu0 0.0
        %1653 = vmatprep.subr.mxu0 0.0
        %1654 = vmatpush1.msra.mxu0 0.0
        %1655 = vmatprep.subr.mxu0 0.0
        %1656 = vmatpush1.msra.mxu0 0.0
        %1657 = vmatprep.subr.mxu0 0.0
        %1658 = vmatpush1.msra.mxu0 0.0
        %1659 = vmatprep.subr.mxu0 0.0
        %1660 = vmatpush1.msra.mxu0 0.0
        %1661 = vmatprep.subr.mxu0 0.0
        %1662 = vmatpush1.msra.mxu0 0.0
        %1663 = vmatprep.subr.mxu0 0.0
        %1664 = vmatpush1.msra.mxu0 0.0
        %1665 = vmatprep.subr.mxu0 0.0
        %1666 = vmatpush1.msra.mxu0 0.0
        %1667 = vmatprep.subr.mxu0 0.0
        %1668 = vmatpush1.msra.mxu0 0.0
        %1669 = vmatprep.mubr.f32.mxu0 0.0
        %1670 = vmatmul.mubr.f32.gmra.mrb[0].mxu0 %v1526
        %v1671 = vpop.f32.mrb[0].mxu0
        %v1672 = vadd.f32 0.0, %v1671
        %v1673 = vpop.f32.mrb[0].mxu0
        %1674 = vdwg.mxu0
        %v1675 = vadd.f32 %v1502, %v1601
        %v1676 = vadd.f32 %v1503, %v1603
        %v1677 = vadd.f32 %v1504, %v1672
        %v1678 = vmax.f32 %v1675, 0.0
        %v1679 = vmax.f32 %v1676, 0.0
        %v1680 = vmax.f32 %v1677, 0.0
        %1681 = vst [vmem:[%s136] sm:$0xff] %v1678
        %1682 = vst [vmem:[%s136 + $0x8] sm:$0xff] %v1679
        %1683 = vst [vmem:[%s136 + $0x10] sm:$0xff] %v1680
        %s1684 = sand.u32 %s71, 1
        %s1685 = scalar_lea.sflag [#allocation3], %s1684
        %s1686 = sand.u32 %s71, 1
        %s1687 = smul.addr %s1686, 24
        %s1688 = scalar_lea.vmem [#allocation2], %s1687
        // Predicated region
        $region29: #{tpu_custom_call.1} parent=27 // pred_check
          %p1689 = pneg %p81
        $region30: #{tpu_custom_call.1} parent=27 // pred_check_branch
          %1691 = sbr.rel (%p1689) target = $region32
        $region31: #{tpu_custom_call.1} parent=27 // pred_region
          %s1693 = ssub.s32 384, 384
          %1694 = vsyncadd %s1685, %s1693
          %s1695 = smul.addr %s16, 3
          %s1696 = smul.addr %s1695, 128
          %s1697 = scalar_lea.hbm %s2, %s1696
          %s1699 = sshll.u32 %s1688, 4
          %s1700 = int_to_ptr.vmem [resolvable:$true] %s1699
          %1702 = dma.vmem_to_hbm [thread:$0]  %s1700, 384, %s1697, %s1685
        $region32: #{tpu_custom_call.1} parent=27 // pred_fallthru
          _
      $region28: #{tpu_custom_call.1} parent=5 // pred_fallthru
        _
      %p1703 = scmp.le.s32.totalorder 2, %s11
      // Predicated region
      $region33: #{tpu_custom_call.1} parent=5 // pred_check
        %p1704 = pneg %p1703
      $region34: #{tpu_custom_call.1} parent=5 // pred_check_branch
        %1706 = sbr.rel (%p1704) target = $region36
      $region35: #{tpu_custom_call.1} parent=5 // pred_region
        %s1707 = ssub.s32 %s11, 2
        // Predicated region
        $region37: #{tpu_custom_call.1} parent=35 // pred_check
          %p1708 = pneg %p87
        $region38: #{tpu_custom_call.1} parent=35 // pred_check_branch
          %1710 = sbr.rel (%p1708) target = $region40
        $region39: #{tpu_custom_call.1} parent=35 // pred_region
          %s1711 = sand.u32 %s72, 1
          %s1712 = scalar_lea.sflag [#allocation3], %s1711
          %s1713 = sand.u32 %s72, 1
          %s1714 = smul.addr %s1713, 24
          %s1715 = scalar_lea.vmem [#allocation2], %s1714
          %1716 = dma.done %s1712, 384
        $region40: #{tpu_custom_call.1} parent=35 // pred_fallthru
          _
      $region36: #{tpu_custom_call.1} parent=5 // pred_fallthru
        _
    $region6: #{tpu_custom_call.1} parent=1 // loop_footer
      %s15 = sadd.s32 1, %s11
    $region7: #{tpu_custom_call.1} parent=1 // loop_footer_branch
      %10 = sbr.rel target = $region3
    $region8: #{tpu_custom_call.1} parent=1 // loop_exit
      _
    %1717 = vsyncpa [#allocation3], 1
    %s1718 = scalar_lea.sflag [#allocation3], 1
    %1719 = vsyncpa %s1718, 1

</llo_original>
